<compile_context>
chip_gen: v7x
topology: tpu7x:2x2x1
jax: 0.10.0
libtpu: 0.0.40
codegen_flags: <defaults>
</compile_context>

<pallas_src>
import functools

import jax
import jax.numpy as jnp
from jax import lax
from jax.experimental import pallas as pl
from jax.experimental.pallas import tpu as pltpu


# ----------------------------------------------------------------------------
# Zero-padded time shift, built as a value (stays in vregs, no scratch stores).
#   y[:, t] = r[:, t + offset], with zeros where t + offset is out of range.
# ----------------------------------------------------------------------------
def _shift_time(r, offset):
    C, T = r.shape
    k = abs(int(offset))
    if k == 0:
        return r
    if k >= T:
        return jnp.zeros_like(r)
    zeros = jnp.zeros((C, k), r.dtype)
    if offset < 0:                                  # y[t] = r[t - k]
        return jnp.concatenate([zeros, r[:, :T - k]], axis=1)
    return jnp.concatenate([r[:, k:], zeros], axis=1)   # y[t] = r[t + k]


# ----------------------------------------------------------------------------
# Fused Pallas kernel: the full encoder stack for `batch_block` sequences.
#   per layer:  x <- Wr @ relu( W01 @ [relu(a); relu(b)] ) + x      (all (C,T))
#   with a[t] = pad(x)[t], b[t] = pad(x)[t + dilation]  (the two conv taps).
# ----------------------------------------------------------------------------
def _encoder_stack_kernel(x_ref, w01_ref, wr_ref, o_ref, *,
                          block_dilations, nb_blocks):
    Bb, C, T = x_ref.shape
    nb_layers = len(block_dilations)
    cdt = w01_ref.dtype                     # MXU operand dtype (bf16)

    for bb in range(Bb):                    # small static batch-block loop
        x0 = x_ref[bb]                      # (C, T) f32 residual stream

        def block_body(blk, x):
            # Statically unrolled dilation pattern of one encoder block;
            # weights are indexed dynamically so code size stays constant.
            for i, d in enumerate(block_dilations):
                pad_l = 0 if d == 1 else d // 2     # tap-0 right time shift
                s_b = 1 if d == 1 else d // 2       # tap-1 left time shift
                idx = blk * nb_layers + i
                w01 = w01_ref[idx]                  # (C_dil, 2C)  bf16
                wr = wr_ref[idx]                    # (C,     C_dil) bf16

                r = jnp.maximum(x, 0.0)             # relu once per layer
                a = _shift_time(r, -pad_l)          # a[t] = relu(x[t - pad_l])
                b = _shift_time(r, s_b)             # b[t] = relu(x[t + s_b])
                ab = jnp.concatenate([a, b], axis=0).astype(cdt)   # (2C, T)

                h = jnp.dot(w01, ab, preferred_element_type=jnp.float32)
                h = jnp.maximum(h, 0.0).astype(cdt)
                x = jnp.dot(wr, h, preferred_element_type=jnp.float32) + x
            return x

        o_ref[bb] = lax.fori_loop(0, nb_blocks, block_body, x0)


# ----------------------------------------------------------------------------
# Wrapper: one pallas_call for the whole encoder, grid over batch groups.
# ----------------------------------------------------------------------------
@functools.partial(jax.jit,
                   static_argnames=("block_dilations", "nb_blocks",
                                    "batch_block"))
def temporal_encoder_pallas(x_nct, w01, wr, *, block_dilations, nb_blocks,
                            batch_block=None):
    B, C, T = x_nct.shape
    L, C_dil, twoC = w01.shape
    nb_layers = len(block_dilations)
    assert twoC == 2 * C and wr.shape == (L, C, C_dil)
    assert L == nb_blocks * nb_layers
    for d in block_dilations:
        # Tap geometry only matches the PyTorch conv for dilation 1 or even.
        assert d == 1 or d % 2 == 0, "dilation must be 1 or even"

    if batch_block is None:
        # >=2 grid steps so ("parallel",) can still use both v7x TensorCores.
        batch_block = 1 if B <= 2 else 2
    Bb = batch_block
    assert B % Bb == 0

    x = x_nct.astype(jnp.float32)           # already NCT: no layout transpose

    kernel = functools.partial(_encoder_stack_kernel,
                               block_dilations=block_dilations,
                               nb_blocks=nb_blocks)
    out = pl.pallas_call(
        kernel,
        out_shape=jax.ShapeDtypeStruct((B, C, T), jnp.float32),
        grid_spec=pltpu.PrefetchScalarGridSpec(
            num_scalar_prefetch=0,
            grid=(B // Bb,),
            in_specs=[
                # activation: Bb full (C, T) sequences per grid step
                pl.BlockSpec((Bb, C, T), lambda g: (g, 0, 0)),
                # stacked weights: constant block index -> stay VMEM-resident
                pl.BlockSpec((L, C_dil, twoC), lambda g: (0, 0, 0)),
                pl.BlockSpec((L, C, C_dil), lambda g: (0, 0, 0)),
            ],
            out_specs=pl.BlockSpec((Bb, C, T), lambda g: (g, 0, 0)),
        ),
        compiler_params=pltpu.CompilerParams(
            dimension_semantics=("parallel",),
        ),
    )(x, w01, wr)
    return out


# ----------------------------------------------------------------------------
# Parameter init (deterministic xavier-normal, matching module weight shapes)
# ----------------------------------------------------------------------------
def init_params(key, nb_blocks, nb_layers, dilation_channels, residual_channels,
                kernel_size=2):
    params = []
    for _ in range(nb_blocks):
        block = []
        for _i in range(nb_layers):
            key, k1, k2 = jax.random.split(key, 3)
            fan_in = residual_channels * kernel_size
            fan_out = dilation_channels * kernel_size
            std = (2.0 / (fan_in + fan_out)) ** 0.5
            w_dil = std * jax.random.normal(
                k1, (dilation_channels, residual_channels, kernel_size),
                jnp.float32)
            fan_in = dilation_channels
            fan_out = residual_channels
            std = (2.0 / (fan_in + fan_out)) ** 0.5
            w_res = std * jax.random.normal(
                k2, (residual_channels, dilation_channels, 1), jnp.float32)
            block.append((w_dil, w_res))
        params.append(block)
    return params


def prepare_weights(params, compute_dtype=jnp.bfloat16):
    """Pre-stack (and pre-cast to bf16) weights once, outside the forward."""
    w01_list, wr_list = [], []
    block_dilations = None
    for block in params:
        dils = []
        for i, (w_dil, w_res) in enumerate(block):
            dils.append(2 ** i)
            # fused K=2C weight: [W_tap0 | W_tap1], shape (C_dil, 2*C_res)
            w01_list.append(jnp.concatenate([w_dil[:, :, 0], w_dil[:, :, 1]],
                                            axis=1))
            wr_list.append(w_res[:, :, 0])                # (C_res, C_dil)
        dils = tuple(dils)
        if block_dilations is None:
            block_dilations = dils
        else:
            assert dils == block_dilations, "blocks must share dilation pattern"
    w01 = jnp.stack(w01_list).astype(compute_dtype)       # (L, C_dil, 2C_res)
    wr = jnp.stack(wr_list).astype(compute_dtype)         # (L, C_res, C_dil)
    return w01, wr, block_dilations, len(params)


# ----------------------------------------------------------------------------
# Pure-JAX f32 reference (mirrors the PyTorch forward exactly) for verification
# ----------------------------------------------------------------------------
def temporal_encoder_ref(x_nct, params):
    x = x_nct
    for block in params:
        for i, (w_dil, w_res) in enumerate(block):
            d = 2 ** i
            pad = (0, 1) if d == 1 else (d // 2, d // 2)
            xp = jnp.pad(x, ((0, 0), (0, 0), pad))
            h = jax.nn.relu(xp)
            h = lax.conv_general_dilated(
                h, w_dil, window_strides=(1,), padding="VALID",
                rhs_dilation=(d,), dimension_numbers=("NCH", "OIH", "NCH"))
            h = jax.nn.relu(h)
            h = lax.conv_general_dilated(
                h, w_res, window_strides=(1,), padding="VALID",
                dimension_numbers=("NCH", "OIH", "NCH"))
            x = h + x
    return x


if __name__ == "__main__":
    # Small synthetic config consistent with the module (scaled down), with
    # T a multiple of 128 so the time-on-lanes blocks are lane-dense.
    nb_layers = 3
    nb_blocks = 2
    residual_channels = 32
    dilation_channels = 32
    B, T = 4, 256

    key = jax.random.PRNGKey(0)
    key, kx = jax.random.split(key)
    x = jax.random.normal(kx, (B, residual_channels, T), jnp.float32)  # NCT

    params = init_params(key, nb_blocks, nb_layers,
                         dilation_channels, residual_channels)
    w01, wr, block_dilations, nbb = prepare_weights(params)

    out = temporal_encoder_pallas(x, w01, wr,
                                  block_dilations=block_dilations,
                                  nb_blocks=nbb, batch_block=2)
    out = jax.block_until_ready(out)

    ref = temporal_encoder_ref(x, params)
    assert out.shape == (B, residual_channels, T)
    # bf16 MXU operands (f32 accumulation) -> looser tolerance than pure f32;
    # structural bugs would exceed these bounds by orders of magnitude.
    max_err = jnp.max(jnp.abs(out - ref))
    mean_err = jnp.mean(jnp.abs(out - ref))
    assert jnp.allclose(out, ref, atol=1e-1, rtol=1e-1), (
        f"mismatch vs reference, max abs err {max_err}")
    assert mean_err < 2e-2, f"mean abs err too large: {mean_err}"

    print("KERNEL_OK")
</pallas_src>

<mosaic_0001>
module attributes {stable_mosaic.version = 11 : i64} {
  func.func @_encoder_stack_kernel(%arg0: i32, %arg1: memref<2x32x256xf32, #tpu.memory_space<vmem>>, %arg2: memref<6x32x64xbf16, #tpu.memory_space<vmem>>, %arg3: memref<6x32x32xbf16, #tpu.memory_space<vmem>>, %arg4: memref<2x32x256xf32, #tpu.memory_space<vmem>>) attributes {dimension_semantics = [#tpu.dimension_semantics<parallel>], iteration_bounds = array<i64: 2>, scalar_prefetch = 0 : i64, scratch_operands = 0 : i64, tpu.core_type = #tpu.core_type<tc>, window_params = [{transform_indices = @transform_0, window_bounds = array<i64: 2, 32, 256>}, {pipeline_mode = #tpu.pipeline_mode<synchronous>, transform_indices = @transform_1, window_bounds = array<i64: 6, 32, 64>}, {pipeline_mode = #tpu.pipeline_mode<synchronous>, transform_indices = @transform_2, window_bounds = array<i64: 6, 32, 32>}, {transform_indices = @transform_3, window_bounds = array<i64: 2, 32, 256>}]} {
    %c0 = arith.constant 0 : index
    %c0_0 = arith.constant 0 : index
    %c0_1 = arith.constant 0 : index
    %0 = vector.load %arg1[%c0, %c0_0, %c0_1] : memref<2x32x256xf32, #tpu.memory_space<vmem>>, vector<1x32x256xf32>
    %1 = vector.shape_cast %0 : vector<1x32x256xf32> to vector<32x256xf32>
    %c0_i32 = arith.constant 0 : i32
    %c2_i32 = arith.constant 2 : i32
    %2 = arith.addi %c0_i32, %c2_i32 : i32
    %c1_i32 = arith.constant 1 : i32
    %3 = scf.for %arg5 = %c0_i32 to %2 step %c1_i32 iter_args(%arg6 = %1) -> (vector<32x256xf32>)  : i32 {
      %c3_i32 = arith.constant 3 : i32
      %14 = arith.muli %arg5, %c3_i32 : i32
      %c0_i32_15 = arith.constant 0 : i32
      %15 = arith.addi %14, %c0_i32_15 : i32
      %16 = arith.index_cast %15 : i32 to index
      %c0_16 = arith.constant 0 : index
      %c0_17 = arith.constant 0 : index
      %17 = vector.load %arg2[%16, %c0_16, %c0_17] : memref<6x32x64xbf16, #tpu.memory_space<vmem>>, vector<1x32x64xbf16>
      %18 = vector.shape_cast %17 : vector<1x32x64xbf16> to vector<32x64xbf16>
      %19 = arith.index_cast %15 : i32 to index
      %c0_18 = arith.constant 0 : index
      %c0_19 = arith.constant 0 : index
      %20 = vector.load %arg3[%19, %c0_18, %c0_19] : memref<6x32x32xbf16, #tpu.memory_space<vmem>>, vector<1x32x32xbf16>
      %21 = vector.shape_cast %20 : vector<1x32x32xbf16> to vector<32x32xbf16>
      %cst = arith.constant 0.000000e+00 : f32
      %22 = vector.broadcast %cst : f32 to vector<32x256xf32>
      %23 = arith.maximumf %arg6, %22 : vector<32x256xf32>
      %cst_20 = arith.constant 0.000000e+00 : f32
      %24 = vector.broadcast %cst_20 : f32 to vector<32x1xf32>
      %25 = vector.extract_strided_slice %23 {offsets = [0, 1], sizes = [32, 255], strides = [1, 1]} : vector<32x256xf32> to vector<32x255xf32>
      %26 = tpu.concatenate %25, %24 in 1 : vector<32x255xf32>, vector<32x1xf32> -> vector<32x256xf32>
      %27 = tpu.concatenate %23, %26 in 0 : vector<32x256xf32>, vector<32x256xf32> -> vector<64x256xf32>
      %28 = arith.truncf %27 : vector<64x256xf32> to vector<64x256xbf16>
      %cst_21 = arith.constant dense<0.000000e+00> : vector<32x256xf32>
      %29 = tpu.matmul %18, %28, %cst_21 {dimension_numbers = #tpu.dot_dimension_numbers<[1], [0], [0], [1], [0, 0, 1, 1], [], []>} : vector<32x64xbf16>, vector<64x256xbf16>, vector<32x256xf32> -> vector<32x256xf32>
      %cst_22 = arith.constant 0.000000e+00 : f32
      %30 = vector.broadcast %cst_22 : f32 to vector<32x256xf32>
      %31 = arith.maximumf %29, %30 : vector<32x256xf32>
      %32 = arith.truncf %31 : vector<32x256xf32> to vector<32x256xbf16>
      %cst_23 = arith.constant dense<0.000000e+00> : vector<32x256xf32>
      %33 = tpu.matmul %21, %32, %cst_23 {dimension_numbers = #tpu.dot_dimension_numbers<[1], [0], [0], [1], [0, 0, 1, 1], [], []>} : vector<32x32xbf16>, vector<32x256xbf16>, vector<32x256xf32> -> vector<32x256xf32>
      %34 = arith.addf %33, %arg6 : vector<32x256xf32>
      %c3_i32_24 = arith.constant 3 : i32
      %35 = arith.muli %arg5, %c3_i32_24 : i32
      %c1_i32_25 = arith.constant 1 : i32
      %36 = arith.addi %35, %c1_i32_25 : i32
      %37 = arith.index_cast %36 : i32 to index
      %c0_26 = arith.constant 0 : index
      %c0_27 = arith.constant 0 : index
      %38 = vector.load %arg2[%37, %c0_26, %c0_27] : memref<6x32x64xbf16, #tpu.memory_space<vmem>>, vector<1x32x64xbf16>
      %39 = vector.shape_cast %38 : vector<1x32x64xbf16> to vector<32x64xbf16>
      %40 = arith.index_cast %36 : i32 to index
      %c0_28 = arith.constant 0 : index
      %c0_29 = arith.constant 0 : index
      %41 = vector.load %arg3[%40, %c0_28, %c0_29] : memref<6x32x32xbf16, #tpu.memory_space<vmem>>, vector<1x32x32xbf16>
      %42 = vector.shape_cast %41 : vector<1x32x32xbf16> to vector<32x32xbf16>
      %cst_30 = arith.constant 0.000000e+00 : f32
      %43 = vector.broadcast %cst_30 : f32 to vector<32x256xf32>
      %44 = arith.maximumf %34, %43 : vector<32x256xf32>
      %cst_31 = arith.constant 0.000000e+00 : f32
      %45 = vector.broadcast %cst_31 : f32 to vector<32x1xf32>
      %46 = vector.extract_strided_slice %44 {offsets = [0, 0], sizes = [32, 255], strides = [1, 1]} : vector<32x256xf32> to vector<32x255xf32>
      %47 = tpu.concatenate %45, %46 in 1 : vector<32x1xf32>, vector<32x255xf32> -> vector<32x256xf32>
      %cst_32 = arith.constant 0.000000e+00 : f32
      %48 = vector.broadcast %cst_32 : f32 to vector<32x1xf32>
      %49 = vector.extract_strided_slice %44 {offsets = [0, 1], sizes = [32, 255], strides = [1, 1]} : vector<32x256xf32> to vector<32x255xf32>
      %50 = tpu.concatenate %49, %48 in 1 : vector<32x255xf32>, vector<32x1xf32> -> vector<32x256xf32>
      %51 = tpu.concatenate %47, %50 in 0 : vector<32x256xf32>, vector<32x256xf32> -> vector<64x256xf32>
      %52 = arith.truncf %51 : vector<64x256xf32> to vector<64x256xbf16>
      %cst_33 = arith.constant dense<0.000000e+00> : vector<32x256xf32>
      %53 = tpu.matmul %39, %52, %cst_33 {dimension_numbers = #tpu.dot_dimension_numbers<[1], [0], [0], [1], [0, 0, 1, 1], [], []>} : vector<32x64xbf16>, vector<64x256xbf16>, vector<32x256xf32> -> vector<32x256xf32>
      %cst_34 = arith.constant 0.000000e+00 : f32
      %54 = vector.broadcast %cst_34 : f32 to vector<32x256xf32>
      %55 = arith.maximumf %53, %54 : vector<32x256xf32>
      %56 = arith.truncf %55 : vector<32x256xf32> to vector<32x256xbf16>
      %cst_35 = arith.constant dense<0.000000e+00> : vector<32x256xf32>
      %57 = tpu.matmul %42, %56, %cst_35 {dimension_numbers = #tpu.dot_dimension_numbers<[1], [0], [0], [1], [0, 0, 1, 1], [], []>} : vector<32x32xbf16>, vector<32x256xbf16>, vector<32x256xf32> -> vector<32x256xf32>
      %58 = arith.addf %57, %34 : vector<32x256xf32>
      %c3_i32_36 = arith.constant 3 : i32
      %59 = arith.muli %arg5, %c3_i32_36 : i32
      %c2_i32_37 = arith.constant 2 : i32
      %60 = arith.addi %59, %c2_i32_37 : i32
      %61 = arith.index_cast %60 : i32 to index
      %c0_38 = arith.constant 0 : index
      %c0_39 = arith.constant 0 : index
      %62 = vector.load %arg2[%61, %c0_38, %c0_39] : memref<6x32x64xbf16, #tpu.memory_space<vmem>>, vector<1x32x64xbf16>
      %63 = vector.shape_cast %62 : vector<1x32x64xbf16> to vector<32x64xbf16>
      %64 = arith.index_cast %60 : i32 to index
      %c0_40 = arith.constant 0 : index
      %c0_41 = arith.constant 0 : index
      %65 = vector.load %arg3[%64, %c0_40, %c0_41] : memref<6x32x32xbf16, #tpu.memory_space<vmem>>, vector<1x32x32xbf16>
      %66 = vector.shape_cast %65 : vector<1x32x32xbf16> to vector<32x32xbf16>
      %cst_42 = arith.constant 0.000000e+00 : f32
      %67 = vector.broadcast %cst_42 : f32 to vector<32x256xf32>
      %68 = arith.maximumf %58, %67 : vector<32x256xf32>
      %cst_43 = arith.constant 0.000000e+00 : f32
      %69 = vector.broadcast %cst_43 : f32 to vector<32x2xf32>
      %70 = vector.extract_strided_slice %68 {offsets = [0, 0], sizes = [32, 254], strides = [1, 1]} : vector<32x256xf32> to vector<32x254xf32>
      %71 = tpu.concatenate %69, %70 in 1 : vector<32x2xf32>, vector<32x254xf32> -> vector<32x256xf32>
      %cst_44 = arith.constant 0.000000e+00 : f32
      %72 = vector.broadcast %cst_44 : f32 to vector<32x2xf32>
      %73 = vector.extract_strided_slice %68 {offsets = [0, 2], sizes = [32, 254], strides = [1, 1]} : vector<32x256xf32> to vector<32x254xf32>
      %74 = tpu.concatenate %73, %72 in 1 : vector<32x254xf32>, vector<32x2xf32> -> vector<32x256xf32>
      %75 = tpu.concatenate %71, %74 in 0 : vector<32x256xf32>, vector<32x256xf32> -> vector<64x256xf32>
      %76 = arith.truncf %75 : vector<64x256xf32> to vector<64x256xbf16>
      %cst_45 = arith.constant dense<0.000000e+00> : vector<32x256xf32>
      %77 = tpu.matmul %63, %76, %cst_45 {dimension_numbers = #tpu.dot_dimension_numbers<[1], [0], [0], [1], [0, 0, 1, 1], [], []>} : vector<32x64xbf16>, vector<64x256xbf16>, vector<32x256xf32> -> vector<32x256xf32>
      %cst_46 = arith.constant 0.000000e+00 : f32
      %78 = vector.broadcast %cst_46 : f32 to vector<32x256xf32>
      %79 = arith.maximumf %77, %78 : vector<32x256xf32>
      %80 = arith.truncf %79 : vector<32x256xf32> to vector<32x256xbf16>
      %cst_47 = arith.constant dense<0.000000e+00> : vector<32x256xf32>
      %81 = tpu.matmul %66, %80, %cst_47 {dimension_numbers = #tpu.dot_dimension_numbers<[1], [0], [0], [1], [0, 0, 1, 1], [], []>} : vector<32x32xbf16>, vector<32x256xbf16>, vector<32x256xf32> -> vector<32x256xf32>
      %82 = arith.addf %81, %58 : vector<32x256xf32>
      scf.yield %82 : vector<32x256xf32>
    }
    %c2_i32_2 = arith.constant 2 : i32
    %c0_3 = arith.constant 0 : index
    %c0_4 = arith.constant 0 : index
    %c0_5 = arith.constant 0 : index
    %4 = vector.load %arg4[%c0_3, %c0_4, %c0_5] : memref<2x32x256xf32, #tpu.memory_space<vmem>>, vector<1x32x256xf32>
    %5 = vector.shape_cast %4 : vector<1x32x256xf32> to vector<32x256xf32>
    %6 = vector.shape_cast %3 : vector<32x256xf32> to vector<1x32x256xf32>
    tpu.vector_store %arg4[%c0_3, %c0_4, %c0_5], %6 {strides = array<i32>} : memref<2x32x256xf32, #tpu.memory_space<vmem>>, vector<1x32x256xf32>,
    %c1 = arith.constant 1 : index
    %c0_6 = arith.constant 0 : index
    %c0_7 = arith.constant 0 : index
    %7 = vector.load %arg1[%c1, %c0_6, %c0_7] : memref<2x32x256xf32, #tpu.memory_space<vmem>>, vector<1x32x256xf32>
    %8 = vector.shape_cast %7 : vector<1x32x256xf32> to vector<32x256xf32>
    %c0_i32_8 = arith.constant 0 : i32
    %c2_i32_9 = arith.constant 2 : i32
    %9 = arith.addi %c0_i32_8, %c2_i32_9 : i32
    %c1_i32_10 = arith.constant 1 : i32
    %10 = scf.for %arg5 = %c0_i32_8 to %9 step %c1_i32_10 iter_args(%arg6 = %8) -> (vector<32x256xf32>)  : i32 {
      %c3_i32 = arith.constant 3 : i32
      %14 = arith.muli %arg5, %c3_i32 : i32
      %c0_i32_15 = arith.constant 0 : i32
      %15 = arith.addi %14, %c0_i32_15 : i32
      %16 = arith.index_cast %15 : i32 to index
      %c0_16 = arith.constant 0 : index
      %c0_17 = arith.constant 0 : index
      %17 = vector.load %arg2[%16, %c0_16, %c0_17] : memref<6x32x64xbf16, #tpu.memory_space<vmem>>, vector<1x32x64xbf16>
      %18 = vector.shape_cast %17 : vector<1x32x64xbf16> to vector<32x64xbf16>
      %19 = arith.index_cast %15 : i32 to index
      %c0_18 = arith.constant 0 : index
      %c0_19 = arith.constant 0 : index
      %20 = vector.load %arg3[%19, %c0_18, %c0_19] : memref<6x32x32xbf16, #tpu.memory_space<vmem>>, vector<1x32x32xbf16>
      %21 = vector.shape_cast %20 : vector<1x32x32xbf16> to vector<32x32xbf16>
      %cst = arith.constant 0.000000e+00 : f32
      %22 = vector.broadcast %cst : f32 to vector<32x256xf32>
      %23 = arith.maximumf %arg6, %22 : vector<32x256xf32>
      %cst_20 = arith.constant 0.000000e+00 : f32
      %24 = vector.broadcast %cst_20 : f32 to vector<32x1xf32>
      %25 = vector.extract_strided_slice %23 {offsets = [0, 1], sizes = [32, 255], strides = [1, 1]} : vector<32x256xf32> to vector<32x255xf32>
      %26 = tpu.concatenate %25, %24 in 1 : vector<32x255xf32>, vector<32x1xf32> -> vector<32x256xf32>
      %27 = tpu.concatenate %23, %26 in 0 : vector<32x256xf32>, vector<32x256xf32> -> vector<64x256xf32>
      %28 = arith.truncf %27 : vector<64x256xf32> to vector<64x256xbf16>
      %cst_21 = arith.constant dense<0.000000e+00> : vector<32x256xf32>
      %29 = tpu.matmul %18, %28, %cst_21 {dimension_numbers = #tpu.dot_dimension_numbers<[1], [0], [0], [1], [0, 0, 1, 1], [], []>} : vector<32x64xbf16>, vector<64x256xbf16>, vector<32x256xf32> -> vector<32x256xf32>
      %cst_22 = arith.constant 0.000000e+00 : f32
      %30 = vector.broadcast %cst_22 : f32 to vector<32x256xf32>
      %31 = arith.maximumf %29, %30 : vector<32x256xf32>
      %32 = arith.truncf %31 : vector<32x256xf32> to vector<32x256xbf16>
      %cst_23 = arith.constant dense<0.000000e+00> : vector<32x256xf32>
      %33 = tpu.matmul %21, %32, %cst_23 {dimension_numbers = #tpu.dot_dimension_numbers<[1], [0], [0], [1], [0, 0, 1, 1], [], []>} : vector<32x32xbf16>, vector<32x256xbf16>, vector<32x256xf32> -> vector<32x256xf32>
      %34 = arith.addf %33, %arg6 : vector<32x256xf32>
      %c3_i32_24 = arith.constant 3 : i32
      %35 = arith.muli %arg5, %c3_i32_24 : i32
      %c1_i32_25 = arith.constant 1 : i32
      %36 = arith.addi %35, %c1_i32_25 : i32
      %37 = arith.index_cast %36 : i32 to index
      %c0_26 = arith.constant 0 : index
      %c0_27 = arith.constant 0 : index
      %38 = vector.load %arg2[%37, %c0_26, %c0_27] : memref<6x32x64xbf16, #tpu.memory_space<vmem>>, vector<1x32x64xbf16>
      %39 = vector.shape_cast %38 : vector<1x32x64xbf16> to vector<32x64xbf16>
      %40 = arith.index_cast %36 : i32 to index
      %c0_28 = arith.constant 0 : index
      %c0_29 = arith.constant 0 : index
      %41 = vector.load %arg3[%40, %c0_28, %c0_29] : memref<6x32x32xbf16, #tpu.memory_space<vmem>>, vector<1x32x32xbf16>
      %42 = vector.shape_cast %41 : vector<1x32x32xbf16> to vector<32x32xbf16>
      %cst_30 = arith.constant 0.000000e+00 : f32
      %43 = vector.broadcast %cst_30 : f32 to vector<32x256xf32>
      %44 = arith.maximumf %34, %43 : vector<32x256xf32>
      %cst_31 = arith.constant 0.000000e+00 : f32
      %45 = vector.broadcast %cst_31 : f32 to vector<32x1xf32>
      %46 = vector.extract_strided_slice %44 {offsets = [0, 0], sizes = [32, 255], strides = [1, 1]} : vector<32x256xf32> to vector<32x255xf32>
      %47 = tpu.concatenate %45, %46 in 1 : vector<32x1xf32>, vector<32x255xf32> -> vector<32x256xf32>
      %cst_32 = arith.constant 0.000000e+00 : f32
      %48 = vector.broadcast %cst_32 : f32 to vector<32x1xf32>
      %49 = vector.extract_strided_slice %44 {offsets = [0, 1], sizes = [32, 255], strides = [1, 1]} : vector<32x256xf32> to vector<32x255xf32>
      %50 = tpu.concatenate %49, %48 in 1 : vector<32x255xf32>, vector<32x1xf32> -> vector<32x256xf32>
      %51 = tpu.concatenate %47, %50 in 0 : vector<32x256xf32>, vector<32x256xf32> -> vector<64x256xf32>
      %52 = arith.truncf %51 : vector<64x256xf32> to vector<64x256xbf16>
      %cst_33 = arith.constant dense<0.000000e+00> : vector<32x256xf32>
      %53 = tpu.matmul %39, %52, %cst_33 {dimension_numbers = #tpu.dot_dimension_numbers<[1], [0], [0], [1], [0, 0, 1, 1], [], []>} : vector<32x64xbf16>, vector<64x256xbf16>, vector<32x256xf32> -> vector<32x256xf32>
      %cst_34 = arith.constant 0.000000e+00 : f32
      %54 = vector.broadcast %cst_34 : f32 to vector<32x256xf32>
      %55 = arith.maximumf %53, %54 : vector<32x256xf32>
      %56 = arith.truncf %55 : vector<32x256xf32> to vector<32x256xbf16>
      %cst_35 = arith.constant dense<0.000000e+00> : vector<32x256xf32>
      %57 = tpu.matmul %42, %56, %cst_35 {dimension_numbers = #tpu.dot_dimension_numbers<[1], [0], [0], [1], [0, 0, 1, 1], [], []>} : vector<32x32xbf16>, vector<32x256xbf16>, vector<32x256xf32> -> vector<32x256xf32>
      %58 = arith.addf %57, %34 : vector<32x256xf32>
      %c3_i32_36 = arith.constant 3 : i32
      %59 = arith.muli %arg5, %c3_i32_36 : i32
      %c2_i32_37 = arith.constant 2 : i32
      %60 = arith.addi %59, %c2_i32_37 : i32
      %61 = arith.index_cast %60 : i32 to index
      %c0_38 = arith.constant 0 : index
      %c0_39 = arith.constant 0 : index
      %62 = vector.load %arg2[%61, %c0_38, %c0_39] : memref<6x32x64xbf16, #tpu.memory_space<vmem>>, vector<1x32x64xbf16>
      %63 = vector.shape_cast %62 : vector<1x32x64xbf16> to vector<32x64xbf16>
      %64 = arith.index_cast %60 : i32 to index
      %c0_40 = arith.constant 0 : index
      %c0_41 = arith.constant 0 : index
      %65 = vector.load %arg3[%64, %c0_40, %c0_41] : memref<6x32x32xbf16, #tpu.memory_space<vmem>>, vector<1x32x32xbf16>
      %66 = vector.shape_cast %65 : vector<1x32x32xbf16> to vector<32x32xbf16>
      %cst_42 = arith.constant 0.000000e+00 : f32
      %67 = vector.broadcast %cst_42 : f32 to vector<32x256xf32>
      %68 = arith.maximumf %58, %67 : vector<32x256xf32>
      %cst_43 = arith.constant 0.000000e+00 : f32
      %69 = vector.broadcast %cst_43 : f32 to vector<32x2xf32>
      %70 = vector.extract_strided_slice %68 {offsets = [0, 0], sizes = [32, 254], strides = [1, 1]} : vector<32x256xf32> to vector<32x254xf32>
      %71 = tpu.concatenate %69, %70 in 1 : vector<32x2xf32>, vector<32x254xf32> -> vector<32x256xf32>
      %cst_44 = arith.constant 0.000000e+00 : f32
      %72 = vector.broadcast %cst_44 : f32 to vector<32x2xf32>
      %73 = vector.extract_strided_slice %68 {offsets = [0, 2], sizes = [32, 254], strides = [1, 1]} : vector<32x256xf32> to vector<32x254xf32>
      %74 = tpu.concatenate %73, %72 in 1 : vector<32x254xf32>, vector<32x2xf32> -> vector<32x256xf32>
      %75 = tpu.concatenate %71, %74 in 0 : vector<32x256xf32>, vector<32x256xf32> -> vector<64x256xf32>
      %76 = arith.truncf %75 : vector<64x256xf32> to vector<64x256xbf16>
      %cst_45 = arith.constant dense<0.000000e+00> : vector<32x256xf32>
      %77 = tpu.matmul %63, %76, %cst_45 {dimension_numbers = #tpu.dot_dimension_numbers<[1], [0], [0], [1], [0, 0, 1, 1], [], []>} : vector<32x64xbf16>, vector<64x256xbf16>, vector<32x256xf32> -> vector<32x256xf32>
      %cst_46 = arith.constant 0.000000e+00 : f32
      %78 = vector.broadcast %cst_46 : f32 to vector<32x256xf32>
      %79 = arith.maximumf %77, %78 : vector<32x256xf32>
      %80 = arith.truncf %79 : vector<32x256xf32> to vector<32x256xbf16>
      %cst_47 = arith.constant dense<0.000000e+00> : vector<32x256xf32>
      %81 = tpu.matmul %66, %80, %cst_47 {dimension_numbers = #tpu.dot_dimension_numbers<[1], [0], [0], [1], [0, 0, 1, 1], [], []>} : vector<32x32xbf16>, vector<32x256xbf16>, vector<32x256xf32> -> vector<32x256xf32>
      %82 = arith.addf %81, %58 : vector<32x256xf32>
      scf.yield %82 : vector<32x256xf32>
    }
    %c2_i32_11 = arith.constant 2 : i32
    %c1_12 = arith.constant 1 : index
    %c0_13 = arith.constant 0 : index
    %c0_14 = arith.constant 0 : index
    %11 = vector.load %arg4[%c1_12, %c0_13, %c0_14] : memref<2x32x256xf32, #tpu.memory_space<vmem>>, vector<1x32x256xf32>
    %12 = vector.shape_cast %11 : vector<1x32x256xf32> to vector<32x256xf32>
    %13 = vector.shape_cast %10 : vector<32x256xf32> to vector<1x32x256xf32>
    tpu.vector_store %arg4[%c1_12, %c0_13, %c0_14], %13 {strides = array<i32>} : memref<2x32x256xf32, #tpu.memory_space<vmem>>, vector<1x32x256xf32>,
    return
  }
  func.func @transform_0(%arg0: i32) -> (i32, i32, i32) {
    %c0_i32 = arith.constant 0 : i32
    %c0_i32_0 = arith.constant 0 : i32
    %c0_i32_1 = arith.constant 0 : i32
    return %arg0, %c0_i32, %c0_i32_0 : i32, i32, i32
  }
  func.func @transform_1(%arg0: i32) -> (i32, i32, i32) {
    %c0_i32 = arith.constant 0 : i32
    %c0_i32_0 = arith.constant 0 : i32
    %c0_i32_1 = arith.constant 0 : i32
    %c0_i32_2 = arith.constant 0 : i32
    return %c0_i32, %c0_i32_0, %c0_i32_1 : i32, i32, i32
  }
  func.func @transform_2(%arg0: i32) -> (i32, i32, i32) {
    %c0_i32 = arith.constant 0 : i32
    %c0_i32_0 = arith.constant 0 : i32
    %c0_i32_1 = arith.constant 0 : i32
    %c0_i32_2 = arith.constant 0 : i32
    return %c0_i32, %c0_i32_0, %c0_i32_1 : i32, i32, i32
  }
  func.func @transform_3(%arg0: i32) -> (i32, i32, i32) {
    %c0_i32 = arith.constant 0 : i32
    %c0_i32_0 = arith.constant 0 : i32
    %c0_i32_1 = arith.constant 0 : i32
    return %arg0, %c0_i32, %c0_i32_0 : i32, i32, i32
  }
}

</mosaic_0001>

<llo_original>
// kernel: temporal_encoder_pallas.1
$region0: #{temporal_encoder_pallas.1}
  #allocation0 [shape = 'u32[]', space=smem, size = 0x4, offset = 0x4, fixed_abs, tag = 'smem constant byte address 0x4 - core index']
  #allocation1 [shape = 'u32[144,128]{1,0:T(1,128)}', space=vmem, size = 0x12000, scoped, tag = 'internal scratch']
  %s0 = inlined_call_operand.hbm [shape: f32[4,32,256], index: 0, kind: input, shape index: {}]
  %s1 = inlined_call_operand.hbm [shape: bf16[6,32,64], index: 1, kind: input, shape index: {}]
  %s2 = inlined_call_operand.hbm [shape: bf16[6,32,32], index: 2, kind: input, shape index: {}]
  %s3 = inlined_call_operand.hbm [shape: f32[4,32,256], index: 3, kind: output, shape index: {}]
  %s4 = sld [smem:[#allocation0]]
  $region71: #{temporal_encoder_pallas.1} parent=0
    _
  %s6 = ssub.s32 1, %s4
  %s7 = scalar_select 0, %s6, %s4
  $region1: #{temporal_encoder_pallas.1} parent=0
    #allocation2 [shape = 'u8[131072]{0}', space=vmem, size = 0x20000, scoped, tag = 'input window, operand 0']
    #allocation3 [shape = 's32[2]{0}', space=sflag, size = 0x8, scoped, tag = 'scoped memory for temporal_encoder_pallas.1']
    #allocation4 [shape = 's32[2]{0}', space=sflag, size = 0x8, scoped, tag = 'scoped memory for temporal_encoder_pallas.1']
    #allocation5 [shape = 'u8[49152]{0}', space=vmem, size = 0xc000, scoped, tag = 'input window, operand 1, single buffered']
    #allocation6 [shape = 's32[1]{0}', space=sflag, size = 0x4, scoped, tag = 'scoped memory for temporal_encoder_pallas.1']
    #allocation7 [shape = 'u8[49152]{0}', space=vmem, size = 0xc000, scoped, tag = 'input window, operand 2, single buffered']
    #allocation8 [shape = 'u8[131072]{0}', space=vmem, size = 0x20000, scoped, tag = 'output window, operand 0']
    %8 = vsyncpa [#allocation3], 0
    %s9 = scalar_lea.sflag [#allocation3], 1
    %10 = vsyncpa %s9, 0
    %11 = vsyncpa [#allocation6], 0
    %12 = vsyncpa [#allocation4], 0
    %s13 = scalar_lea.sflag [#allocation4], 1
    %14 = vsyncpa %s13, 0
    loop: start=0, step=1, limit=4
    $region2: #{temporal_encoder_pallas.1} parent=1 // loop_pre_header
      _
    $region3: #{temporal_encoder_pallas.1} parent=1 // loop_header
      %s16 = sphi 0, %s20
      %p17 = scmp.ge.s32.totalorder %s16, 4
      %s26 = sphi 0, %s28
      %s29 = sphi 0, %s26
      %s30 = sphi 0, %s29
      %s46 = sphi 0, %s30
      %s50 = sphi 0, %s50
      %s52 = sphi 0, %s50
      %s53 = sphi 0, %s52
      %s67 = sphi 0, %s53
      %s71 = sphi 0, %s71
      %s73 = sphi 0, %s71
      %s74 = sphi 0, %s73
      %s88 = sphi 0, %s74
      %s94 = sphi 0, %s96
      %s97 = sphi 0, %s94
      %s98 = sphi 0, %s97
      %s114 = sphi 0, %s98
    $region4: #{temporal_encoder_pallas.1} parent=1 // loop_header_branch
      %19 = sbr.rel (%p17) target = $region8
    $region5: #{temporal_encoder_pallas.1} parent=1 // loop_body
      %s21 = ssub.s32 %s16, 1
      %s22 = ssub.s32 %s16, 2
      %s23 = sadd.s32 %s16, 1
      %s24 = ssub.s32 %s16, %s23
      %p25 = scmp.eq.s32.totalorder %s24, 0
      %s27 = sadd.s32 %s26, 1
      %s28 = scalar_select %p25, %s26, %s27
      %p31 = pneg %p25
      %p32 = scmp.eq.s32.totalorder %s16, 1
      %p33 = por %p31, %p32
      %p34 = scmp.ne.s32.totalorder %s26, %s29
      %p35 = scmp.eq.s32.totalorder %s16, 0
      %p36 = por %p34, %p35
      %p37 = scmp.ne.s32.totalorder %s26, %s29
      %p38 = scmp.eq.s32.totalorder %s21, 1
      %p39 = por %p37, %p38
      %p40 = scmp.ne.s32.totalorder %s29, %s30
      %p41 = scmp.eq.s32.totalorder %s21, 0
      %p42 = por %p40, %p41
      %p43 = scmp.ne.s32.totalorder %s29, %s30
      %p44 = scmp.eq.s32.totalorder %s22, 1
      %p45 = por %p43, %p44
      %p47 = scmp.ne.s32.totalorder %s30, %s46
      %p48 = scmp.eq.s32.totalorder %s22, 0
      %p49 = por %p47, %p48
      %s51 = sadd.s32 %s50, 1
      %p54 = scmp.eq.s32.totalorder %s16, 1
      %p55 = scmp.ne.s32.totalorder %s50, %s52
      %p56 = scmp.eq.s32.totalorder %s16, 0
      %p57 = por %p55, %p56
      %p58 = scmp.ne.s32.totalorder %s50, %s52
      %p59 = scmp.eq.s32.totalorder %s21, 1
      %p60 = por %p58, %p59
      %p61 = scmp.ne.s32.totalorder %s52, %s53
      %p62 = scmp.eq.s32.totalorder %s21, 0
      %p63 = por %p61, %p62
      %p64 = scmp.ne.s32.totalorder %s52, %s53
      %p65 = scmp.eq.s32.totalorder %s22, 1
      %p66 = por %p64, %p65
      %p68 = scmp.ne.s32.totalorder %s53, %s67
      %p69 = scmp.eq.s32.totalorder %s22, 0
      %p70 = por %p68, %p69
      %s72 = sadd.s32 %s71, 1
      %p75 = scmp.eq.s32.totalorder %s16, 1
      %p76 = scmp.ne.s32.totalorder %s71, %s73
      %p77 = scmp.eq.s32.totalorder %s16, 0
      %p78 = por %p76, %p77
      %p79 = scmp.ne.s32.totalorder %s71, %s73
      %p80 = scmp.eq.s32.totalorder %s21, 1
      %p81 = por %p79, %p80
      %p82 = scmp.ne.s32.totalorder %s73, %s74
      %p83 = scmp.eq.s32.totalorder %s21, 0
      %p84 = por %p82, %p83
      %p85 = scmp.ne.s32.totalorder %s73, %s74
      %p86 = scmp.eq.s32.totalorder %s22, 1
      %p87 = por %p85, %p86
      %p89 = scmp.ne.s32.totalorder %s74, %s88
      %p90 = scmp.eq.s32.totalorder %s22, 0
      %p91 = por %p89, %p90
      %s92 = ssub.s32 %s16, %s23
      %p93 = scmp.eq.s32.totalorder %s92, 0
      %s95 = sadd.s32 %s94, 1
      %s96 = scalar_select %p93, %s94, %s95
      %p99 = pneg %p93
      %p100 = scmp.eq.s32.totalorder %s16, 1
      %p101 = por %p99, %p100
      %p102 = scmp.ne.s32.totalorder %s94, %s97
      %p103 = scmp.eq.s32.totalorder %s16, 0
      %p104 = por %p102, %p103
      %p105 = scmp.ne.s32.totalorder %s94, %s97
      %p106 = scmp.eq.s32.totalorder %s21, 1
      %p107 = por %p105, %p106
      %p108 = scmp.ne.s32.totalorder %s97, %s98
      %p109 = scmp.eq.s32.totalorder %s21, 0
      %p110 = por %p108, %p109
      %p111 = scmp.ne.s32.totalorder %s97, %s98
      %p112 = scmp.eq.s32.totalorder %s22, 1
      %p113 = por %p111, %p112
      %p115 = scmp.ne.s32.totalorder %s98, %s114
      %p116 = scmp.eq.s32.totalorder %s22, 0
      %p117 = por %p115, %p116
      %p118 = scmp.le.s32.totalorder 1, %s16
      %p119 = scmp.lt.s32.totalorder %s16, 3
      %p120 = pnand %p118, %p119
      %p121 = pneg %p120
      // Predicated region
      $region9: #{temporal_encoder_pallas.1} parent=5 // pred_check
        _
      $region10: #{temporal_encoder_pallas.1} parent=5 // pred_check_branch
        %123 = sbr.rel (%p120) target = $region12
      $region11: #{temporal_encoder_pallas.1} parent=5 // pred_region
        %s124 = ssub.s32 %s16, 1
        // Predicated region
        $region13: #{temporal_encoder_pallas.1} parent=11 // pred_check
          %p125 = pneg %p63
        $region14: #{temporal_encoder_pallas.1} parent=11 // pred_check_branch
          %127 = sbr.rel (%p125) target = $region16
        $region15: #{temporal_encoder_pallas.1} parent=11 // pred_region
          %s129 = ssub.s32 1536, 1536
          %130 = vsyncadd [#allocation6], %s129
          %s131 = sshll.u32 [#allocation5], 4
          %s132 = int_to_ptr.vmem [resolvable:$true] %s131
          %137 = dma.hbm_to_vmem [thread:$0]  %s1, 1536, %s132, [#allocation6], 64, 64, 4
        $region16: #{temporal_encoder_pallas.1} parent=11 // pred_fallthru
          _
        // Predicated region
        $region17: #{temporal_encoder_pallas.1} parent=11 // pred_check
          %p138 = pneg %p84
        $region18: #{temporal_encoder_pallas.1} parent=11 // pred_check_branch
          %140 = sbr.rel (%p138) target = $region20
        $region19: #{temporal_encoder_pallas.1} parent=11 // pred_region
          %s142 = ssub.s32 1536, 1536
          %143 = vsyncadd [#allocation6], %s142
          %s144 = sshll.u32 [#allocation7], 4
          %s145 = int_to_ptr.vmem [resolvable:$true] %s144
          %150 = dma.hbm_to_vmem [thread:$0]  %s2, 1536, %s145, [#allocation6], 64, 64, 4
        $region20: #{temporal_encoder_pallas.1} parent=11 // pred_fallthru
          _
      $region12: #{temporal_encoder_pallas.1} parent=5 // pred_fallthru
        _
      %p151 = scmp.lt.s32.totalorder %s16, 2
      // Predicated region
      $region21: #{temporal_encoder_pallas.1} parent=5 // pred_check
        %p152 = pneg %p151
      $region22: #{temporal_encoder_pallas.1} parent=5 // pred_check_branch
        %154 = sbr.rel (%p152) target = $region24
      $region23: #{temporal_encoder_pallas.1} parent=5 // pred_region
        // Predicated region
        $region25: #{temporal_encoder_pallas.1} parent=23 // pred_check
          %p155 = pneg %p36
        $region26: #{temporal_encoder_pallas.1} parent=23 // pred_check_branch
          %157 = sbr.rel (%p155) target = $region28
        $region27: #{temporal_encoder_pallas.1} parent=23 // pred_region
          %s158 = sand.u32 %s26, 1
          %s159 = scalar_lea.sflag [#allocation3], %s158
          %s160 = sand.u32 %s26, 1
          %s161 = smul.addr %s160, 128
          %s162 = scalar_lea.vmem [#allocation2], %s161
          %s163 = smul.u32 2, %s16
          %s165 = ssub.s32 2048, 2048
          %166 = vsyncadd %s159, %s165
          %s167 = smul.addr %s163, 8
          %s168 = smul.addr %s167, 128
          %s169 = scalar_lea.hbm %s0, %s168
          %s170 = sshll.u32 %s162, 4
          %s171 = int_to_ptr.vmem [resolvable:$true] %s170
          %176 = dma.hbm_to_vmem [thread:$0]  %s169, 2048, %s171, %s159, 256, 256, 16
        $region28: #{temporal_encoder_pallas.1} parent=23 // pred_fallthru
          _
      $region24: #{temporal_encoder_pallas.1} parent=5 // pred_fallthru
        _
      %p177 = scmp.le.s32.totalorder 1, %s16
      %p178 = scmp.lt.s32.totalorder %s16, 3
      %p179 = pnand %p177, %p178
      %p180 = pneg %p179
      // Predicated region
      $region29: #{temporal_encoder_pallas.1} parent=5 // pred_check
        _
      $region30: #{temporal_encoder_pallas.1} parent=5 // pred_check_branch
        %182 = sbr.rel (%p179) target = $region32
      $region31: #{temporal_encoder_pallas.1} parent=5 // pred_region
        %s183 = ssub.s32 %s16, 1
        %s184 = sand.u32 %s29, 1
        %s185 = scalar_lea.sflag [#allocation3], %s184
        %s186 = sand.u32 %s29, 1
        %s187 = smul.addr %s186, 128
        %s188 = scalar_lea.vmem [#allocation2], %s187
        // Predicated region
        $region33: #{temporal_encoder_pallas.1} parent=31 // pred_check
          %p189 = pneg %p42
        $region34: #{temporal_encoder_pallas.1} parent=31 // pred_check_branch
          %191 = sbr.rel (%p189) target = $region36
        $region35: #{temporal_encoder_pallas.1} parent=31 // pred_region
          %192 = dma.done %s185, 2048
        $region36: #{temporal_encoder_pallas.1} parent=31 // pred_fallthru
          _
        // Predicated region
        $region37: #{temporal_encoder_pallas.1} parent=31 // pred_check
          %p193 = pneg %p63
        $region38: #{temporal_encoder_pallas.1} parent=31 // pred_check_branch
          %195 = sbr.rel (%p193) target = $region40
        $region39: #{temporal_encoder_pallas.1} parent=31 // pred_region
          %196 = dma.done [#allocation6], 1536
        $region40: #{temporal_encoder_pallas.1} parent=31 // pred_fallthru
          _
        // Predicated region
        $region41: #{temporal_encoder_pallas.1} parent=31 // pred_check
          %p197 = pneg %p84
        $region42: #{temporal_encoder_pallas.1} parent=31 // pred_check_branch
          %199 = sbr.rel (%p197) target = $region44
        $region43: #{temporal_encoder_pallas.1} parent=31 // pred_region
          %200 = dma.done [#allocation6], 1536
        $region44: #{temporal_encoder_pallas.1} parent=31 // pred_fallthru
          _
        %s201 = sand.u32 %s29, 1
        %s202 = scalar_lea.sflag [#allocation3], %s201
        %s203 = sand.u32 %s29, 1
        %s204 = smul.addr %s203, 128
        %s205 = scalar_lea.vmem [#allocation2], %s204
        %p206 = pneg %p42
        %p207 = pneg %p39
        %p208 = pneg %p63
        %p209 = pneg %p60
        %p210 = pneg %p84
        %p211 = pneg %p81
        %p212 = pneg %p110
        %p213 = pneg %p107
        %s214 = sand.u32 %s97, 1
        %s215 = scalar_lea.sflag [#allocation4], %s214
        %s216 = sand.u32 %s97, 1
        %s217 = smul.addr %s216, 128
        %s218 = scalar_lea.vmem [#allocation8], %s217
        %s219 = smul.u32 2, %s21
        %s220 = smul.u32 2, %s21
        %v222 = vld [vmem:[%s188] sm:$0xff]
        %v223 = vld [vmem:[%s188 + $0x8] sm:$0xff]
        %v224 = vld [vmem:[%s188 + $0x10] sm:$0xff]
        %v225 = vld [vmem:[%s188 + $0x18] sm:$0xff]
        %v226 = vld [vmem:[%s188 + $0x20] sm:$0xff]
        %v227 = vld [vmem:[%s188 + $0x28] sm:$0xff]
        %v228 = vld [vmem:[%s188 + $0x30] sm:$0xff]
        %v229 = vld [vmem:[%s188 + $0x38] sm:$0xff]
        loop: start=0, step=1, limit=2
        $region45: #{temporal_encoder_pallas.1} parent=31 // loop_pre_header
          _
        $region46: #{temporal_encoder_pallas.1} parent=31 // loop_header
          %s231 = sphi 0, %s235
          %p232 = scmp.ge.s32.totalorder %s231, 2
          %v236 = vphi %v222, %v956
          %v237 = vphi %v223, %v958
          %v238 = vphi %v224, %v960
          %v239 = vphi %v225, %v962
          %v240 = vphi %v226, %v966
          %v241 = vphi %v227, %v968
          %v242 = vphi %v228, %v970
          %v243 = vphi %v229, %v972
        $region47: #{temporal_encoder_pallas.1} parent=31 // loop_header_branch
          %234 = sbr.rel (%p232) target = $region51
        $region48: #{temporal_encoder_pallas.1} parent=31 // loop_body
          %s244 = smul.u32 %s231, 3
          %s245 = smul.u32 %s244, 4
          %s246 = smul.addr %s245, 4
          %s247 = scalar_lea.vmem [#allocation5], %s246
          %v248 = vld [vmem:[%s247] sm:$0xf]
          %v249 = vld [vmem:[%s247 + $0x4] sm:$0xf]
          %v250 = vld [vmem:[%s247 + $0x8] sm:$0xf]
          %v251 = vld [vmem:[%s247 + $0xc] sm:$0xf]
          %s252 = smul.addr %s245, 4
          %s253 = scalar_lea.vmem [#allocation7], %s252
          %v254 = vld [vmem:[%s253] sm:$0xf]
          %v255 = vld [vmem:[%s253 + $0x4] sm:$0xf]
          %v256 = vld [vmem:[%s253 + $0x8] sm:$0xf]
          %v257 = vld [vmem:[%s253 + $0xc] sm:$0xf]
          %v258 = vmax.f32 %v236, 0.0
          %v259 = vmax.f32 %v237, 0.0
          %v260 = vmax.f32 %v238, 0.0
          %v261 = vmax.f32 %v239, 0.0
          %v262 = vmax.f32 %v240, 0.0
          %v263 = vmax.f32 %v241, 0.0
          %v264 = vmax.f32 %v242, 0.0
          %v265 = vmax.f32 %v243, 0.0
          %274 = vrot.lane.b32.xlu0 %v258, 127
          %v275 = vpop.permute.xlu0 %274
          %276 = vrot.lane.b32.xlu0 %v259, 127
          %v277 = vpop.permute.xlu0 %276
          %278 = vrot.lane.b32.xlu0 %v260, 127
          %v279 = vpop.permute.xlu0 %278
          %280 = vrot.lane.b32.xlu0 %v261, 127
          %v281 = vpop.permute.xlu0 %280
          %282 = vrot.lane.b32.xlu0 %v262, 127
          %v283 = vpop.permute.xlu0 %282
          %284 = vrot.lane.b32.xlu0 %v263, 127
          %v285 = vpop.permute.xlu0 %284
          %286 = vrot.lane.b32.xlu0 %v264, 127
          %v287 = vpop.permute.xlu0 %286
          %288 = vrot.lane.b32.xlu0 %v265, 127
          %v289 = vpop.permute.xlu0 %288
          %vm290 = vcmask 1039360
          %v291 = vsel %vm290, %v275, %v277
          %v292 = vsel %vm290, %v279, %v281
          %v293 = vsel %vm290, %v283, %v285
          %v294 = vsel %vm290, %v287, %v289
          %v303 = vsel %vm290, %v277, 0.0
          %v304 = vsel %vm290, %v281, 0.0
          %v305 = vsel %vm290, %v285, 0.0
          %v306 = vsel %vm290, %v289, 0.0
          %v307 = vpack.c.bf16 %v260, %v258
          %v308 = vpack.c.bf16 %v261, %v259
          %v309 = vpack.c.bf16 %v264, %v262
          %v310 = vpack.c.bf16 %v265, %v263
          %v311 = vpack.c.bf16 %v292, %v291
          %v312 = vpack.c.bf16 %v304, %v303
          %v313 = vpack.c.bf16 %v294, %v293
          %v314 = vpack.c.bf16 %v306, %v305
          %v319 = vunpack.c.l.b16 %v248
          %v320 = vunpack.c.l.b16 %v249
          %v321 = vunpack.c.l.b16 %v250
          %v322 = vunpack.c.l.b16 %v251
          %v323 = vpack.c.b16 %v320, %v319
          %v324 = vpack.c.b16 %v322, %v321
          %vm325 = vcmask 523264
          %v327 = vsel %vm325, %v323, 0
          %v330 = vsel %vm325, %v324, 0
          %332 = vmatprep.subr.bf16.mxu0 %v308
          %333 = vmatpush1.bf16.msra.mxu0 %v307
          %334 = vmatprep.subr.bf16.mxu0 %v310
          %335 = vmatpush1.bf16.msra.mxu0 %v309
          %336 = vmatprep.subr.bf16.mxu0 %v312
          %337 = vmatpush1.bf16.msra.mxu0 %v311
          %338 = vmatprep.subr.bf16.mxu0 %v314
          %339 = vmatpush1.bf16.msra.mxu0 %v313
          %340 = vmatprep.subr.bf16.mxu0 0
          %341 = vmatpush1.bf16.msra.mxu0 0
          %342 = vmatprep.subr.bf16.mxu0 0
          %343 = vmatpush1.bf16.msra.mxu0 0
          %344 = vmatprep.subr.bf16.mxu0 0
          %345 = vmatpush1.bf16.msra.mxu0 0
          %346 = vmatprep.subr.bf16.mxu0 0
          %347 = vmatpush1.bf16.msra.mxu0 0
          %348 = vmatprep.subr.bf16.mxu0 0
          %349 = vmatpush1.bf16.msra.mxu0 0
          %350 = vmatprep.subr.bf16.mxu0 0
          %351 = vmatpush1.bf16.msra.mxu0 0
          %352 = vmatprep.subr.bf16.mxu0 0
          %353 = vmatpush1.bf16.msra.mxu0 0
          %354 = vmatprep.subr.bf16.mxu0 0
          %355 = vmatpush1.bf16.msra.mxu0 0
          %356 = vmatprep.subr.bf16.mxu0 0
          %357 = vmatpush1.bf16.msra.mxu0 0
          %358 = vmatprep.subr.bf16.mxu0 0
          %359 = vmatpush1.bf16.msra.mxu0 0
          %360 = vmatprep.subr.bf16.mxu0 0
          %361 = vmatpush1.bf16.msra.mxu0 0
          %362 = vmatprep.subr.bf16.mxu0 0
          %363 = vmatpush1.bf16.msra.mxu0 0
          %364 = vmatprep.mubr.bf16.mxu0 0
          %365 = vmatmul.mubr.bf16.gmra.mrb[0].mxu0 %v327
          %v366 = vpop.f32.mrb[0].mxu0
          %v367 = vadd.f32 0.0, %v366
          %v368 = vpop.f32.mrb[0].mxu0
          %v369 = vadd.f32 0.0, %v368
          %v370 = vpop.f32.mrb[0].mxu0
          %v371 = vadd.f32 0.0, %v370
          %v372 = vpop.f32.mrb[0].mxu0
          %v373 = vadd.f32 0.0, %v372
          %374 = vmatprep.mubr.bf16.mxu0 0
          %375 = vmatmul.mubr.bf16.gmra.mrb[0].mxu0 %v330
          %v376 = vpop.f32.mrb[0].mxu0
          %v377 = vadd.f32 0.0, %v376
          %v378 = vpop.f32.mrb[0].mxu0
          %v379 = vadd.f32 0.0, %v378
          %v380 = vpop.f32.mrb[0].mxu0
          %v381 = vadd.f32 0.0, %v380
          %v382 = vpop.f32.mrb[0].mxu0
          %v383 = vadd.f32 0.0, %v382
          %384 = vdwg.mxu0
          %v385 = vmax.f32 %v367, 0.0
          %v386 = vmax.f32 %v369, 0.0
          %v387 = vmax.f32 %v371, 0.0
          %v388 = vmax.f32 %v373, 0.0
          %v389 = vmax.f32 %v377, 0.0
          %v390 = vmax.f32 %v379, 0.0
          %v391 = vmax.f32 %v381, 0.0
          %v392 = vmax.f32 %v383, 0.0
          %v393 = vpack.c.bf16 %v387, %v385
          %v394 = vpack.c.bf16 %v388, %v386
          %v395 = vpack.c.bf16 %v391, %v389
          %v396 = vpack.c.bf16 %v392, %v390
          %v401 = vunpack.c.l.b16 %v254
          %v402 = vunpack.c.l.b16 %v255
          %v403 = vunpack.c.l.b16 %v256
          %v404 = vunpack.c.l.b16 %v257
          %v405 = vpack.c.b16 %v402, %v401
          %v406 = vpack.c.b16 %v404, %v403
          %vm407 = vcmask 261120
          %v409 = vsel %vm407, %v405, 0
          %v412 = vsel %vm407, %v406, 0
          %414 = vmatprep.subr.bf16.mxu0 %v394
          %415 = vmatpush1.bf16.msra.mxu0 %v393
          %416 = vmatprep.subr.bf16.mxu0 %v396
          %417 = vmatpush1.bf16.msra.mxu0 %v395
          %418 = vmatprep.subr.bf16.mxu0 0
          %419 = vmatpush1.bf16.msra.mxu0 0
          %420 = vmatprep.subr.bf16.mxu0 0
          %421 = vmatpush1.bf16.msra.mxu0 0
          %422 = vmatprep.subr.bf16.mxu0 0
          %423 = vmatpush1.bf16.msra.mxu0 0
          %424 = vmatprep.subr.bf16.mxu0 0
          %425 = vmatpush1.bf16.msra.mxu0 0
          %426 = vmatprep.subr.bf16.mxu0 0
          %427 = vmatpush1.bf16.msra.mxu0 0
          %428 = vmatprep.subr.bf16.mxu0 0
          %429 = vmatpush1.bf16.msra.mxu0 0
          %430 = vmatprep.subr.bf16.mxu0 0
          %431 = vmatpush1.bf16.msra.mxu0 0
          %432 = vmatprep.subr.bf16.mxu0 0
          %433 = vmatpush1.bf16.msra.mxu0 0
          %434 = vmatprep.subr.bf16.mxu0 0
          %435 = vmatpush1.bf16.msra.mxu0 0
          %436 = vmatprep.subr.bf16.mxu0 0
          %437 = vmatpush1.bf16.msra.mxu0 0
          %438 = vmatprep.subr.bf16.mxu0 0
          %439 = vmatpush1.bf16.msra.mxu0 0
          %440 = vmatprep.subr.bf16.mxu0 0
          %441 = vmatpush1.bf16.msra.mxu0 0
          %442 = vmatprep.subr.bf16.mxu0 0
          %443 = vmatpush1.bf16.msra.mxu0 0
          %444 = vmatprep.subr.bf16.mxu0 0
          %445 = vmatpush1.bf16.msra.mxu0 0
          %446 = vmatprep.mubr.bf16.mxu0 0
          %447 = vmatmul.mubr.bf16.gmra.mrb[0].mxu0 %v409
          %v448 = vpop.f32.mrb[0].mxu0
          %v449 = vadd.f32 %v236, %v448
          %v450 = vpop.f32.mrb[0].mxu0
          %v451 = vadd.f32 %v237, %v450
          %v452 = vpop.f32.mrb[0].mxu0
          %v453 = vadd.f32 %v238, %v452
          %v454 = vpop.f32.mrb[0].mxu0
          %v455 = vadd.f32 %v239, %v454
          %456 = vmatprep.mubr.bf16.mxu0 0
          %457 = vmatmul.mubr.bf16.gmra.mrb[0].mxu0 %v412
          %v458 = vpop.f32.mrb[0].mxu0
          %v459 = vadd.f32 %v240, %v458
          %v460 = vpop.f32.mrb[0].mxu0
          %v461 = vadd.f32 %v241, %v460
          %v462 = vpop.f32.mrb[0].mxu0
          %v463 = vadd.f32 %v242, %v462
          %v464 = vpop.f32.mrb[0].mxu0
          %v465 = vadd.f32 %v243, %v464
          %466 = vdwg.mxu0
          %s467 = sadd.s32 %s244, 1
          %s468 = smul.u32 %s467, 4
          %s469 = smul.addr %s468, 4
          %s470 = scalar_lea.vmem [#allocation5], %s469
          %v471 = vld [vmem:[%s470] sm:$0xf]
          %v472 = vld [vmem:[%s470 + $0x4] sm:$0xf]
          %v473 = vld [vmem:[%s470 + $0x8] sm:$0xf]
          %v474 = vld [vmem:[%s470 + $0xc] sm:$0xf]
          %s475 = smul.addr %s468, 4
          %s476 = scalar_lea.vmem [#allocation7], %s475
          %v477 = vld [vmem:[%s476] sm:$0xf]
          %v478 = vld [vmem:[%s476 + $0x4] sm:$0xf]
          %v479 = vld [vmem:[%s476 + $0x8] sm:$0xf]
          %v480 = vld [vmem:[%s476 + $0xc] sm:$0xf]
          %v481 = vmax.f32 %v449, 0.0
          %v482 = vmax.f32 %v451, 0.0
          %v483 = vmax.f32 %v453, 0.0
          %v484 = vmax.f32 %v455, 0.0
          %v485 = vmax.f32 %v459, 0.0
          %v486 = vmax.f32 %v461, 0.0
          %v487 = vmax.f32 %v463, 0.0
          %v488 = vmax.f32 %v465, 0.0
          %497 = vrot.lane.b32.xlu0 %v481, 1
          %v498 = vpop.permute.xlu0 %497
          %499 = vrot.lane.b32.xlu0 %v482, 1
          %v500 = vpop.permute.xlu0 %499
          %501 = vrot.lane.b32.xlu0 %v483, 1
          %v502 = vpop.permute.xlu0 %501
          %503 = vrot.lane.b32.xlu0 %v484, 1
          %v504 = vpop.permute.xlu0 %503
          %505 = vrot.lane.b32.xlu0 %v485, 1
          %v506 = vpop.permute.xlu0 %505
          %507 = vrot.lane.b32.xlu0 %v486, 1
          %v508 = vpop.permute.xlu0 %507
          %509 = vrot.lane.b32.xlu0 %v487, 1
          %v510 = vpop.permute.xlu0 %509
          %511 = vrot.lane.b32.xlu0 %v488, 1
          %v512 = vpop.permute.xlu0 %511
          %vm513 = vcmask 7168
          %v514 = vsel %vm513, %v498, %v500
          %v515 = vsel %vm513, %v502, %v504
          %v516 = vsel %vm513, %v506, %v508
          %v517 = vsel %vm513, %v510, %v512
          %v526 = vsel %vm513, 0.0, %v498
          %v527 = vsel %vm513, 0.0, %v502
          %v528 = vsel %vm513, 0.0, %v506
          %v529 = vsel %vm513, 0.0, %v510
          %530 = vrot.lane.b32.xlu0 %v481, 127
          %v531 = vpop.permute.xlu0 %530
          %532 = vrot.lane.b32.xlu0 %v482, 127
          %v533 = vpop.permute.xlu0 %532
          %534 = vrot.lane.b32.xlu0 %v483, 127
          %v535 = vpop.permute.xlu0 %534
          %536 = vrot.lane.b32.xlu0 %v484, 127
          %v537 = vpop.permute.xlu0 %536
          %538 = vrot.lane.b32.xlu0 %v485, 127
          %v539 = vpop.permute.xlu0 %538
          %540 = vrot.lane.b32.xlu0 %v486, 127
          %v541 = vpop.permute.xlu0 %540
          %542 = vrot.lane.b32.xlu0 %v487, 127
          %v543 = vpop.permute.xlu0 %542
          %544 = vrot.lane.b32.xlu0 %v488, 127
          %v545 = vpop.permute.xlu0 %544
          %v546 = vsel %vm290, %v531, %v533
          %v547 = vsel %vm290, %v535, %v537
          %v548 = vsel %vm290, %v539, %v541
          %v549 = vsel %vm290, %v543, %v545
          %v558 = vsel %vm290, %v533, 0.0
          %v559 = vsel %vm290, %v537, 0.0
          %v560 = vsel %vm290, %v541, 0.0
          %v561 = vsel %vm290, %v545, 0.0
          %v562 = vpack.c.bf16 %v527, %v526
          %v563 = vpack.c.bf16 %v515, %v514
          %v564 = vpack.c.bf16 %v529, %v528
          %v565 = vpack.c.bf16 %v517, %v516
          %v566 = vpack.c.bf16 %v547, %v546
          %v567 = vpack.c.bf16 %v559, %v558
          %v568 = vpack.c.bf16 %v549, %v548
          %v569 = vpack.c.bf16 %v561, %v560
          %v574 = vunpack.c.l.b16 %v471
          %v575 = vunpack.c.l.b16 %v472
          %v576 = vunpack.c.l.b16 %v473
          %v577 = vunpack.c.l.b16 %v474
          %v578 = vpack.c.b16 %v575, %v574
          %v579 = vpack.c.b16 %v577, %v576
          %v581 = vsel %vm325, %v578, 0
          %v584 = vsel %vm325, %v579, 0
          %586 = vmatprep.subr.bf16.mxu0 %v563
          %587 = vmatpush1.bf16.msra.mxu0 %v562
          %588 = vmatprep.subr.bf16.mxu0 %v565
          %589 = vmatpush1.bf16.msra.mxu0 %v564
          %590 = vmatprep.subr.bf16.mxu0 %v567
          %591 = vmatpush1.bf16.msra.mxu0 %v566
          %592 = vmatprep.subr.bf16.mxu0 %v569
          %593 = vmatpush1.bf16.msra.mxu0 %v568
          %594 = vmatprep.subr.bf16.mxu0 0
          %595 = vmatpush1.bf16.msra.mxu0 0
          %596 = vmatprep.subr.bf16.mxu0 0
          %597 = vmatpush1.bf16.msra.mxu0 0
          %598 = vmatprep.subr.bf16.mxu0 0
          %599 = vmatpush1.bf16.msra.mxu0 0
          %600 = vmatprep.subr.bf16.mxu0 0
          %601 = vmatpush1.bf16.msra.mxu0 0
          %602 = vmatprep.subr.bf16.mxu0 0
          %603 = vmatpush1.bf16.msra.mxu0 0
          %604 = vmatprep.subr.bf16.mxu0 0
          %605 = vmatpush1.bf16.msra.mxu0 0
          %606 = vmatprep.subr.bf16.mxu0 0
          %607 = vmatpush1.bf16.msra.mxu0 0
          %608 = vmatprep.subr.bf16.mxu0 0
          %609 = vmatpush1.bf16.msra.mxu0 0
          %610 = vmatprep.subr.bf16.mxu0 0
          %611 = vmatpush1.bf16.msra.mxu0 0
          %612 = vmatprep.subr.bf16.mxu0 0
          %613 = vmatpush1.bf16.msra.mxu0 0
          %614 = vmatprep.subr.bf16.mxu0 0
          %615 = vmatpush1.bf16.msra.mxu0 0
          %616 = vmatprep.subr.bf16.mxu0 0
          %617 = vmatpush1.bf16.msra.mxu0 0
          %618 = vmatprep.mubr.bf16.mxu0 0
          %619 = vmatmul.mubr.bf16.gmra.mrb[0].mxu0 %v581
          %v620 = vpop.f32.mrb[0].mxu0
          %v621 = vadd.f32 0.0, %v620
          %v622 = vpop.f32.mrb[0].mxu0
          %v623 = vadd.f32 0.0, %v622
          %v624 = vpop.f32.mrb[0].mxu0
          %v625 = vadd.f32 0.0, %v624
          %v626 = vpop.f32.mrb[0].mxu0
          %v627 = vadd.f32 0.0, %v626
          %628 = vmatprep.mubr.bf16.mxu0 0
          %629 = vmatmul.mubr.bf16.gmra.mrb[0].mxu0 %v584
          %v630 = vpop.f32.mrb[0].mxu0
          %v631 = vadd.f32 0.0, %v630
          %v632 = vpop.f32.mrb[0].mxu0
          %v633 = vadd.f32 0.0, %v632
          %v634 = vpop.f32.mrb[0].mxu0
          %v635 = vadd.f32 0.0, %v634
          %v636 = vpop.f32.mrb[0].mxu0
          %v637 = vadd.f32 0.0, %v636
          %638 = vdwg.mxu0
          %v639 = vmax.f32 %v621, 0.0
          %v640 = vmax.f32 %v623, 0.0
          %v641 = vmax.f32 %v625, 0.0
          %v642 = vmax.f32 %v627, 0.0
          %v643 = vmax.f32 %v631, 0.0
          %v644 = vmax.f32 %v633, 0.0
          %v645 = vmax.f32 %v635, 0.0
          %v646 = vmax.f32 %v637, 0.0
          %v647 = vpack.c.bf16 %v641, %v639
          %v648 = vpack.c.bf16 %v642, %v640
          %v649 = vpack.c.bf16 %v645, %v643
          %v650 = vpack.c.bf16 %v646, %v644
          %v655 = vunpack.c.l.b16 %v477
          %v656 = vunpack.c.l.b16 %v478
          %v657 = vunpack.c.l.b16 %v479
          %v658 = vunpack.c.l.b16 %v480
          %v659 = vpack.c.b16 %v656, %v655
          %v660 = vpack.c.b16 %v658, %v657
          %v662 = vsel %vm407, %v659, 0
          %v665 = vsel %vm407, %v660, 0
          %667 = vmatprep.subr.bf16.mxu0 %v648
          %668 = vmatpush1.bf16.msra.mxu0 %v647
          %669 = vmatprep.subr.bf16.mxu0 %v650
          %670 = vmatpush1.bf16.msra.mxu0 %v649
          %671 = vmatprep.subr.bf16.mxu0 0
          %672 = vmatpush1.bf16.msra.mxu0 0
          %673 = vmatprep.subr.bf16.mxu0 0
          %674 = vmatpush1.bf16.msra.mxu0 0
          %675 = vmatprep.subr.bf16.mxu0 0
          %676 = vmatpush1.bf16.msra.mxu0 0
          %677 = vmatprep.subr.bf16.mxu0 0
          %678 = vmatpush1.bf16.msra.mxu0 0
          %679 = vmatprep.subr.bf16.mxu0 0
          %680 = vmatpush1.bf16.msra.mxu0 0
          %681 = vmatprep.subr.bf16.mxu0 0
          %682 = vmatpush1.bf16.msra.mxu0 0
          %683 = vmatprep.subr.bf16.mxu0 0
          %684 = vmatpush1.bf16.msra.mxu0 0
          %685 = vmatprep.subr.bf16.mxu0 0
          %686 = vmatpush1.bf16.msra.mxu0 0
          %687 = vmatprep.subr.bf16.mxu0 0
          %688 = vmatpush1.bf16.msra.mxu0 0
          %689 = vmatprep.subr.bf16.mxu0 0
          %690 = vmatpush1.bf16.msra.mxu0 0
          %691 = vmatprep.subr.bf16.mxu0 0
          %692 = vmatpush1.bf16.msra.mxu0 0
          %693 = vmatprep.subr.bf16.mxu0 0
          %694 = vmatpush1.bf16.msra.mxu0 0
          %695 = vmatprep.subr.bf16.mxu0 0
          %696 = vmatpush1.bf16.msra.mxu0 0
          %697 = vmatprep.subr.bf16.mxu0 0
          %698 = vmatpush1.bf16.msra.mxu0 0
          %699 = vmatprep.mubr.bf16.mxu0 0
          %700 = vmatmul.mubr.bf16.gmra.mrb[0].mxu0 %v662
          %v701 = vpop.f32.mrb[0].mxu0
          %v702 = vadd.f32 %v449, %v701
          %v703 = vpop.f32.mrb[0].mxu0
          %v704 = vadd.f32 %v451, %v703
          %v705 = vpop.f32.mrb[0].mxu0
          %v706 = vadd.f32 %v453, %v705
          %v707 = vpop.f32.mrb[0].mxu0
          %v708 = vadd.f32 %v455, %v707
          %709 = vmatprep.mubr.bf16.mxu0 0
          %710 = vmatmul.mubr.bf16.gmra.mrb[0].mxu0 %v665
          %v711 = vpop.f32.mrb[0].mxu0
          %v712 = vadd.f32 %v459, %v711
          %v713 = vpop.f32.mrb[0].mxu0
          %v714 = vadd.f32 %v461, %v713
          %v715 = vpop.f32.mrb[0].mxu0
          %v716 = vadd.f32 %v463, %v715
          %v717 = vpop.f32.mrb[0].mxu0
          %v718 = vadd.f32 %v465, %v717
          %719 = vdwg.mxu0
          %s720 = sadd.s32 %s244, 2
          %s721 = smul.u32 %s720, 4
          %s722 = smul.addr %s721, 4
          %s723 = scalar_lea.vmem [#allocation5], %s722
          %v724 = vld [vmem:[%s723] sm:$0xf]
          %v725 = vld [vmem:[%s723 + $0x4] sm:$0xf]
          %v726 = vld [vmem:[%s723 + $0x8] sm:$0xf]
          %v727 = vld [vmem:[%s723 + $0xc] sm:$0xf]
          %s728 = smul.addr %s721, 4
          %s729 = scalar_lea.vmem [#allocation7], %s728
          %v730 = vld [vmem:[%s729] sm:$0xf]
          %v731 = vld [vmem:[%s729 + $0x4] sm:$0xf]
          %v732 = vld [vmem:[%s729 + $0x8] sm:$0xf]
          %v733 = vld [vmem:[%s729 + $0xc] sm:$0xf]
          %v734 = vmax.f32 %v702, 0.0
          %v735 = vmax.f32 %v704, 0.0
          %v736 = vmax.f32 %v706, 0.0
          %v737 = vmax.f32 %v708, 0.0
          %v738 = vmax.f32 %v712, 0.0
          %v739 = vmax.f32 %v714, 0.0
          %v740 = vmax.f32 %v716, 0.0
          %v741 = vmax.f32 %v718, 0.0
          %750 = vrot.lane.b32.xlu0 %v734, 2
          %v751 = vpop.permute.xlu0 %750
          %752 = vrot.lane.b32.xlu0 %v735, 2
          %v753 = vpop.permute.xlu0 %752
          %754 = vrot.lane.b32.xlu0 %v736, 2
          %v755 = vpop.permute.xlu0 %754
          %756 = vrot.lane.b32.xlu0 %v737, 2
          %v757 = vpop.permute.xlu0 %756
          %758 = vrot.lane.b32.xlu0 %v738, 2
          %v759 = vpop.permute.xlu0 %758
          %760 = vrot.lane.b32.xlu0 %v739, 2
          %v761 = vpop.permute.xlu0 %760
          %762 = vrot.lane.b32.xlu0 %v740, 2
          %v763 = vpop.permute.xlu0 %762
          %764 = vrot.lane.b32.xlu0 %v741, 2
          %v765 = vpop.permute.xlu0 %764
          %vm766 = vcmask 15360
          %v767 = vsel %vm766, %v751, %v753
          %v768 = vsel %vm766, %v755, %v757
          %v769 = vsel %vm766, %v759, %v761
          %v770 = vsel %vm766, %v763, %v765
          %v779 = vsel %vm766, 0.0, %v751
          %v780 = vsel %vm766, 0.0, %v755
          %v781 = vsel %vm766, 0.0, %v759
          %v782 = vsel %vm766, 0.0, %v763
          %783 = vrot.lane.b32.xlu0 %v734, 126
          %v784 = vpop.permute.xlu0 %783
          %785 = vrot.lane.b32.xlu0 %v735, 126
          %v786 = vpop.permute.xlu0 %785
          %787 = vrot.lane.b32.xlu0 %v736, 126
          %v788 = vpop.permute.xlu0 %787
          %789 = vrot.lane.b32.xlu0 %v737, 126
          %v790 = vpop.permute.xlu0 %789
          %791 = vrot.lane.b32.xlu0 %v738, 126
          %v792 = vpop.permute.xlu0 %791
          %793 = vrot.lane.b32.xlu0 %v739, 126
          %v794 = vpop.permute.xlu0 %793
          %795 = vrot.lane.b32.xlu0 %v740, 126
          %v796 = vpop.permute.xlu0 %795
          %797 = vrot.lane.b32.xlu0 %v741, 126
          %v798 = vpop.permute.xlu0 %797
          %vm799 = vcmask 1031168
          %v800 = vsel %vm799, %v784, %v786
          %v801 = vsel %vm799, %v788, %v790
          %v802 = vsel %vm799, %v792, %v794
          %v803 = vsel %vm799, %v796, %v798
          %v812 = vsel %vm799, %v786, 0.0
          %v813 = vsel %vm799, %v790, 0.0
          %v814 = vsel %vm799, %v794, 0.0
          %v815 = vsel %vm799, %v798, 0.0
          %v816 = vpack.c.bf16 %v780, %v779
          %v817 = vpack.c.bf16 %v768, %v767
          %v818 = vpack.c.bf16 %v782, %v781
          %v819 = vpack.c.bf16 %v770, %v769
          %v820 = vpack.c.bf16 %v801, %v800
          %v821 = vpack.c.bf16 %v813, %v812
          %v822 = vpack.c.bf16 %v803, %v802
          %v823 = vpack.c.bf16 %v815, %v814
          %v828 = vunpack.c.l.b16 %v724
          %v829 = vunpack.c.l.b16 %v725
          %v830 = vunpack.c.l.b16 %v726
          %v831 = vunpack.c.l.b16 %v727
          %v832 = vpack.c.b16 %v829, %v828
          %v833 = vpack.c.b16 %v831, %v830
          %v835 = vsel %vm325, %v832, 0
          %v838 = vsel %vm325, %v833, 0
          %840 = vmatprep.subr.bf16.mxu0 %v817
          %841 = vmatpush1.bf16.msra.mxu0 %v816
          %842 = vmatprep.subr.bf16.mxu0 %v819
          %843 = vmatpush1.bf16.msra.mxu0 %v818
          %844 = vmatprep.subr.bf16.mxu0 %v821
          %845 = vmatpush1.bf16.msra.mxu0 %v820
          %846 = vmatprep.subr.bf16.mxu0 %v823
          %847 = vmatpush1.bf16.msra.mxu0 %v822
          %848 = vmatprep.subr.bf16.mxu0 0
          %849 = vmatpush1.bf16.msra.mxu0 0
          %850 = vmatprep.subr.bf16.mxu0 0
          %851 = vmatpush1.bf16.msra.mxu0 0
          %852 = vmatprep.subr.bf16.mxu0 0
          %853 = vmatpush1.bf16.msra.mxu0 0
          %854 = vmatprep.subr.bf16.mxu0 0
          %855 = vmatpush1.bf16.msra.mxu0 0
          %856 = vmatprep.subr.bf16.mxu0 0
          %857 = vmatpush1.bf16.msra.mxu0 0
          %858 = vmatprep.subr.bf16.mxu0 0
          %859 = vmatpush1.bf16.msra.mxu0 0
          %860 = vmatprep.subr.bf16.mxu0 0
          %861 = vmatpush1.bf16.msra.mxu0 0
          %862 = vmatprep.subr.bf16.mxu0 0
          %863 = vmatpush1.bf16.msra.mxu0 0
          %864 = vmatprep.subr.bf16.mxu0 0
          %865 = vmatpush1.bf16.msra.mxu0 0
          %866 = vmatprep.subr.bf16.mxu0 0
          %867 = vmatpush1.bf16.msra.mxu0 0
          %868 = vmatprep.subr.bf16.mxu0 0
          %869 = vmatpush1.bf16.msra.mxu0 0
          %870 = vmatprep.subr.bf16.mxu0 0
          %871 = vmatpush1.bf16.msra.mxu0 0
          %872 = vmatprep.mubr.bf16.mxu0 0
          %873 = vmatmul.mubr.bf16.gmra.mrb[0].mxu0 %v835
          %v874 = vpop.f32.mrb[0].mxu0
          %v875 = vadd.f32 0.0, %v874
          %v876 = vpop.f32.mrb[0].mxu0
          %v877 = vadd.f32 0.0, %v876
          %v878 = vpop.f32.mrb[0].mxu0
          %v879 = vadd.f32 0.0, %v878
          %v880 = vpop.f32.mrb[0].mxu0
          %v881 = vadd.f32 0.0, %v880
          %882 = vmatprep.mubr.bf16.mxu0 0
          %883 = vmatmul.mubr.bf16.gmra.mrb[0].mxu0 %v838
          %v884 = vpop.f32.mrb[0].mxu0
          %v885 = vadd.f32 0.0, %v884
          %v886 = vpop.f32.mrb[0].mxu0
          %v887 = vadd.f32 0.0, %v886
          %v888 = vpop.f32.mrb[0].mxu0
          %v889 = vadd.f32 0.0, %v888
          %v890 = vpop.f32.mrb[0].mxu0
          %v891 = vadd.f32 0.0, %v890
          %892 = vdwg.mxu0
          %v893 = vmax.f32 %v875, 0.0
          %v894 = vmax.f32 %v877, 0.0
          %v895 = vmax.f32 %v879, 0.0
          %v896 = vmax.f32 %v881, 0.0
          %v897 = vmax.f32 %v885, 0.0
          %v898 = vmax.f32 %v887, 0.0
          %v899 = vmax.f32 %v889, 0.0
          %v900 = vmax.f32 %v891, 0.0
          %v901 = vpack.c.bf16 %v895, %v893
          %v902 = vpack.c.bf16 %v896, %v894
          %v903 = vpack.c.bf16 %v899, %v897
          %v904 = vpack.c.bf16 %v900, %v898
          %v909 = vunpack.c.l.b16 %v730
          %v910 = vunpack.c.l.b16 %v731
          %v911 = vunpack.c.l.b16 %v732
          %v912 = vunpack.c.l.b16 %v733
          %v913 = vpack.c.b16 %v910, %v909
          %v914 = vpack.c.b16 %v912, %v911
          %v916 = vsel %vm407, %v913, 0
          %v919 = vsel %vm407, %v914, 0
          %921 = vmatprep.subr.bf16.mxu0 %v902
          %922 = vmatpush1.bf16.msra.mxu0 %v901
          %923 = vmatprep.subr.bf16.mxu0 %v904
          %924 = vmatpush1.bf16.msra.mxu0 %v903
          %925 = vmatprep.subr.bf16.mxu0 0
          %926 = vmatpush1.bf16.msra.mxu0 0
          %927 = vmatprep.subr.bf16.mxu0 0
          %928 = vmatpush1.bf16.msra.mxu0 0
          %929 = vmatprep.subr.bf16.mxu0 0
          %930 = vmatpush1.bf16.msra.mxu0 0
          %931 = vmatprep.subr.bf16.mxu0 0
          %932 = vmatpush1.bf16.msra.mxu0 0
          %933 = vmatprep.subr.bf16.mxu0 0
          %934 = vmatpush1.bf16.msra.mxu0 0
          %935 = vmatprep.subr.bf16.mxu0 0
          %936 = vmatpush1.bf16.msra.mxu0 0
          %937 = vmatprep.subr.bf16.mxu0 0
          %938 = vmatpush1.bf16.msra.mxu0 0
          %939 = vmatprep.subr.bf16.mxu0 0
          %940 = vmatpush1.bf16.msra.mxu0 0
          %941 = vmatprep.subr.bf16.mxu0 0
          %942 = vmatpush1.bf16.msra.mxu0 0
          %943 = vmatprep.subr.bf16.mxu0 0
          %944 = vmatpush1.bf16.msra.mxu0 0
          %945 = vmatprep.subr.bf16.mxu0 0
          %946 = vmatpush1.bf16.msra.mxu0 0
          %947 = vmatprep.subr.bf16.mxu0 0
          %948 = vmatpush1.bf16.msra.mxu0 0
          %949 = vmatprep.subr.bf16.mxu0 0
          %950 = vmatpush1.bf16.msra.mxu0 0
          %951 = vmatprep.subr.bf16.mxu0 0
          %952 = vmatpush1.bf16.msra.mxu0 0
          %953 = vmatprep.mubr.bf16.mxu0 0
          %954 = vmatmul.mubr.bf16.gmra.mrb[0].mxu0 %v916
          %v955 = vpop.f32.mrb[0].mxu0
          %v956 = vadd.f32 %v702, %v955
          %v957 = vpop.f32.mrb[0].mxu0
          %v958 = vadd.f32 %v704, %v957
          %v959 = vpop.f32.mrb[0].mxu0
          %v960 = vadd.f32 %v706, %v959
          %v961 = vpop.f32.mrb[0].mxu0
          %v962 = vadd.f32 %v708, %v961
          %963 = vmatprep.mubr.bf16.mxu0 0
          %964 = vmatmul.mubr.bf16.gmra.mrb[0].mxu0 %v919
          %v965 = vpop.f32.mrb[0].mxu0
          %v966 = vadd.f32 %v712, %v965
          %v967 = vpop.f32.mrb[0].mxu0
          %v968 = vadd.f32 %v714, %v967
          %v969 = vpop.f32.mrb[0].mxu0
          %v970 = vadd.f32 %v716, %v969
          %v971 = vpop.f32.mrb[0].mxu0
          %v972 = vadd.f32 %v718, %v971
          %973 = vdwg.mxu0
        $region49: #{temporal_encoder_pallas.1} parent=31 // loop_footer
          %s235 = sadd.s32 1, %s231
        $region50: #{temporal_encoder_pallas.1} parent=31 // loop_footer_branch
          %230 = sbr.rel target = $region46
        $region51: #{temporal_encoder_pallas.1} parent=31 // loop_exit
          _
        %974 = vst [vmem:[%s218] sm:$0xff] %v236
        %975 = vst [vmem:[%s218 + $0x8] sm:$0xff] %v237
        %976 = vst [vmem:[%s218 + $0x10] sm:$0xff] %v238
        %977 = vst [vmem:[%s218 + $0x18] sm:$0xff] %v239
        %978 = vst [vmem:[%s218 + $0x20] sm:$0xff] %v240
        %979 = vst [vmem:[%s218 + $0x28] sm:$0xff] %v241
        %980 = vst [vmem:[%s218 + $0x30] sm:$0xff] %v242
        %981 = vst [vmem:[%s218 + $0x38] sm:$0xff] %v243
        %s982 = scalar_lea.vmem %s188, 64 [#allocation2]
        %v983 = vld [vmem:[%s982] sm:$0xff]
        %v984 = vld [vmem:[%s982 + $0x8] sm:$0xff]
        %v985 = vld [vmem:[%s982 + $0x10] sm:$0xff]
        %v986 = vld [vmem:[%s982 + $0x18] sm:$0xff]
        %v987 = vld [vmem:[%s982 + $0x20] sm:$0xff]
        %v988 = vld [vmem:[%s982 + $0x28] sm:$0xff]
        %v989 = vld [vmem:[%s982 + $0x30] sm:$0xff]
        %v990 = vld [vmem:[%s982 + $0x38] sm:$0xff]
        loop: start=0, step=1, limit=2
        $region52: #{temporal_encoder_pallas.1} parent=31 // loop_pre_header
          _
        $region53: #{temporal_encoder_pallas.1} parent=31 // loop_header
          %s992 = sphi 0, %s996
          %p993 = scmp.ge.s32.totalorder %s992, 2
          %v997 = vphi %v983, %v1717
          %v998 = vphi %v984, %v1719
          %v999 = vphi %v985, %v1721
          %v1000 = vphi %v986, %v1723
          %v1001 = vphi %v987, %v1727
          %v1002 = vphi %v988, %v1729
          %v1003 = vphi %v989, %v1731
          %v1004 = vphi %v990, %v1733
        $region54: #{temporal_encoder_pallas.1} parent=31 // loop_header_branch
          %995 = sbr.rel (%p993) target = $region58
        $region55: #{temporal_encoder_pallas.1} parent=31 // loop_body
          %s1005 = smul.u32 %s992, 3
          %s1006 = smul.u32 %s1005, 4
          %s1007 = smul.addr %s1006, 4
          %s1008 = scalar_lea.vmem [#allocation5], %s1007
          %v1009 = vld [vmem:[%s1008] sm:$0xf]
          %v1010 = vld [vmem:[%s1008 + $0x4] sm:$0xf]
          %v1011 = vld [vmem:[%s1008 + $0x8] sm:$0xf]
          %v1012 = vld [vmem:[%s1008 + $0xc] sm:$0xf]
          %s1013 = smul.addr %s1006, 4
          %s1014 = scalar_lea.vmem [#allocation7], %s1013
          %v1015 = vld [vmem:[%s1014] sm:$0xf]
          %v1016 = vld [vmem:[%s1014 + $0x4] sm:$0xf]
          %v1017 = vld [vmem:[%s1014 + $0x8] sm:$0xf]
          %v1018 = vld [vmem:[%s1014 + $0xc] sm:$0xf]
          %v1019 = vmax.f32 %v997, 0.0
          %v1020 = vmax.f32 %v998, 0.0
          %v1021 = vmax.f32 %v999, 0.0
          %v1022 = vmax.f32 %v1000, 0.0
          %v1023 = vmax.f32 %v1001, 0.0
          %v1024 = vmax.f32 %v1002, 0.0
          %v1025 = vmax.f32 %v1003, 0.0
          %v1026 = vmax.f32 %v1004, 0.0
          %1035 = vrot.lane.b32.xlu0 %v1019, 127
          %v1036 = vpop.permute.xlu0 %1035
          %1037 = vrot.lane.b32.xlu0 %v1020, 127
          %v1038 = vpop.permute.xlu0 %1037
          %1039 = vrot.lane.b32.xlu0 %v1021, 127
          %v1040 = vpop.permute.xlu0 %1039
          %1041 = vrot.lane.b32.xlu0 %v1022, 127
          %v1042 = vpop.permute.xlu0 %1041
          %1043 = vrot.lane.b32.xlu0 %v1023, 127
          %v1044 = vpop.permute.xlu0 %1043
          %1045 = vrot.lane.b32.xlu0 %v1024, 127
          %v1046 = vpop.permute.xlu0 %1045
          %1047 = vrot.lane.b32.xlu0 %v1025, 127
          %v1048 = vpop.permute.xlu0 %1047
          %1049 = vrot.lane.b32.xlu0 %v1026, 127
          %v1050 = vpop.permute.xlu0 %1049
          %vm1051 = vcmask 1039360
          %v1052 = vsel %vm1051, %v1036, %v1038
          %v1053 = vsel %vm1051, %v1040, %v1042
          %v1054 = vsel %vm1051, %v1044, %v1046
          %v1055 = vsel %vm1051, %v1048, %v1050
          %v1064 = vsel %vm1051, %v1038, 0.0
          %v1065 = vsel %vm1051, %v1042, 0.0
          %v1066 = vsel %vm1051, %v1046, 0.0
          %v1067 = vsel %vm1051, %v1050, 0.0
          %v1068 = vpack.c.bf16 %v1021, %v1019
          %v1069 = vpack.c.bf16 %v1022, %v1020
          %v1070 = vpack.c.bf16 %v1025, %v1023
          %v1071 = vpack.c.bf16 %v1026, %v1024
          %v1072 = vpack.c.bf16 %v1053, %v1052
          %v1073 = vpack.c.bf16 %v1065, %v1064
          %v1074 = vpack.c.bf16 %v1055, %v1054
          %v1075 = vpack.c.bf16 %v1067, %v1066
          %v1080 = vunpack.c.l.b16 %v1009
          %v1081 = vunpack.c.l.b16 %v1010
          %v1082 = vunpack.c.l.b16 %v1011
          %v1083 = vunpack.c.l.b16 %v1012
          %v1084 = vpack.c.b16 %v1081, %v1080
          %v1085 = vpack.c.b16 %v1083, %v1082
          %vm1086 = vcmask 523264
          %v1088 = vsel %vm1086, %v1084, 0
          %v1091 = vsel %vm1086, %v1085, 0
          %1093 = vmatprep.subr.bf16.mxu0 %v1069
          %1094 = vmatpush1.bf16.msra.mxu0 %v1068
          %1095 = vmatprep.subr.bf16.mxu0 %v1071
          %1096 = vmatpush1.bf16.msra.mxu0 %v1070
          %1097 = vmatprep.subr.bf16.mxu0 %v1073
          %1098 = vmatpush1.bf16.msra.mxu0 %v1072
          %1099 = vmatprep.subr.bf16.mxu0 %v1075
          %1100 = vmatpush1.bf16.msra.mxu0 %v1074
          %1101 = vmatprep.subr.bf16.mxu0 0
          %1102 = vmatpush1.bf16.msra.mxu0 0
          %1103 = vmatprep.subr.bf16.mxu0 0
          %1104 = vmatpush1.bf16.msra.mxu0 0
          %1105 = vmatprep.subr.bf16.mxu0 0
          %1106 = vmatpush1.bf16.msra.mxu0 0
          %1107 = vmatprep.subr.bf16.mxu0 0
          %1108 = vmatpush1.bf16.msra.mxu0 0
          %1109 = vmatprep.subr.bf16.mxu0 0
          %1110 = vmatpush1.bf16.msra.mxu0 0
          %1111 = vmatprep.subr.bf16.mxu0 0
          %1112 = vmatpush1.bf16.msra.mxu0 0
          %1113 = vmatprep.subr.bf16.mxu0 0
          %1114 = vmatpush1.bf16.msra.mxu0 0
          %1115 = vmatprep.subr.bf16.mxu0 0
          %1116 = vmatpush1.bf16.msra.mxu0 0
          %1117 = vmatprep.subr.bf16.mxu0 0
          %1118 = vmatpush1.bf16.msra.mxu0 0
          %1119 = vmatprep.subr.bf16.mxu0 0
          %1120 = vmatpush1.bf16.msra.mxu0 0
          %1121 = vmatprep.subr.bf16.mxu0 0
          %1122 = vmatpush1.bf16.msra.mxu0 0
          %1123 = vmatprep.subr.bf16.mxu0 0
          %1124 = vmatpush1.bf16.msra.mxu0 0
          %1125 = vmatprep.mubr.bf16.mxu0 0
          %1126 = vmatmul.mubr.bf16.gmra.mrb[0].mxu0 %v1088
          %v1127 = vpop.f32.mrb[0].mxu0
          %v1128 = vadd.f32 0.0, %v1127
          %v1129 = vpop.f32.mrb[0].mxu0
          %v1130 = vadd.f32 0.0, %v1129
          %v1131 = vpop.f32.mrb[0].mxu0
          %v1132 = vadd.f32 0.0, %v1131
          %v1133 = vpop.f32.mrb[0].mxu0
          %v1134 = vadd.f32 0.0, %v1133
          %1135 = vmatprep.mubr.bf16.mxu0 0
          %1136 = vmatmul.mubr.bf16.gmra.mrb[0].mxu0 %v1091
          %v1137 = vpop.f32.mrb[0].mxu0
          %v1138 = vadd.f32 0.0, %v1137
          %v1139 = vpop.f32.mrb[0].mxu0
          %v1140 = vadd.f32 0.0, %v1139
          %v1141 = vpop.f32.mrb[0].mxu0
          %v1142 = vadd.f32 0.0, %v1141
          %v1143 = vpop.f32.mrb[0].mxu0
          %v1144 = vadd.f32 0.0, %v1143
          %1145 = vdwg.mxu0
          %v1146 = vmax.f32 %v1128, 0.0
          %v1147 = vmax.f32 %v1130, 0.0
          %v1148 = vmax.f32 %v1132, 0.0
          %v1149 = vmax.f32 %v1134, 0.0
          %v1150 = vmax.f32 %v1138, 0.0
          %v1151 = vmax.f32 %v1140, 0.0
          %v1152 = vmax.f32 %v1142, 0.0
          %v1153 = vmax.f32 %v1144, 0.0
          %v1154 = vpack.c.bf16 %v1148, %v1146
          %v1155 = vpack.c.bf16 %v1149, %v1147
          %v1156 = vpack.c.bf16 %v1152, %v1150
          %v1157 = vpack.c.bf16 %v1153, %v1151
          %v1162 = vunpack.c.l.b16 %v1015
          %v1163 = vunpack.c.l.b16 %v1016
          %v1164 = vunpack.c.l.b16 %v1017
          %v1165 = vunpack.c.l.b16 %v1018
          %v1166 = vpack.c.b16 %v1163, %v1162
          %v1167 = vpack.c.b16 %v1165, %v1164
          %vm1168 = vcmask 261120
          %v1170 = vsel %vm1168, %v1166, 0
          %v1173 = vsel %vm1168, %v1167, 0
          %1175 = vmatprep.subr.bf16.mxu0 %v1155
          %1176 = vmatpush1.bf16.msra.mxu0 %v1154
          %1177 = vmatprep.subr.bf16.mxu0 %v1157
          %1178 = vmatpush1.bf16.msra.mxu0 %v1156
          %1179 = vmatprep.subr.bf16.mxu0 0
          %1180 = vmatpush1.bf16.msra.mxu0 0
          %1181 = vmatprep.subr.bf16.mxu0 0
          %1182 = vmatpush1.bf16.msra.mxu0 0
          %1183 = vmatprep.subr.bf16.mxu0 0
          %1184 = vmatpush1.bf16.msra.mxu0 0
          %1185 = vmatprep.subr.bf16.mxu0 0
          %1186 = vmatpush1.bf16.msra.mxu0 0
          %1187 = vmatprep.subr.bf16.mxu0 0
          %1188 = vmatpush1.bf16.msra.mxu0 0
          %1189 = vmatprep.subr.bf16.mxu0 0
          %1190 = vmatpush1.bf16.msra.mxu0 0
          %1191 = vmatprep.subr.bf16.mxu0 0
          %1192 = vmatpush1.bf16.msra.mxu0 0
          %1193 = vmatprep.subr.bf16.mxu0 0
          %1194 = vmatpush1.bf16.msra.mxu0 0
          %1195 = vmatprep.subr.bf16.mxu0 0
          %1196 = vmatpush1.bf16.msra.mxu0 0
          %1197 = vmatprep.subr.bf16.mxu0 0
          %1198 = vmatpush1.bf16.msra.mxu0 0
          %1199 = vmatprep.subr.bf16.mxu0 0
          %1200 = vmatpush1.bf16.msra.mxu0 0
          %1201 = vmatprep.subr.bf16.mxu0 0
          %1202 = vmatpush1.bf16.msra.mxu0 0
          %1203 = vmatprep.subr.bf16.mxu0 0
          %1204 = vmatpush1.bf16.msra.mxu0 0
          %1205 = vmatprep.subr.bf16.mxu0 0
          %1206 = vmatpush1.bf16.msra.mxu0 0
          %1207 = vmatprep.mubr.bf16.mxu0 0
          %1208 = vmatmul.mubr.bf16.gmra.mrb[0].mxu0 %v1170
          %v1209 = vpop.f32.mrb[0].mxu0
          %v1210 = vadd.f32 %v997, %v1209
          %v1211 = vpop.f32.mrb[0].mxu0
          %v1212 = vadd.f32 %v998, %v1211
          %v1213 = vpop.f32.mrb[0].mxu0
          %v1214 = vadd.f32 %v999, %v1213
          %v1215 = vpop.f32.mrb[0].mxu0
          %v1216 = vadd.f32 %v1000, %v1215
          %1217 = vmatprep.mubr.bf16.mxu0 0
          %1218 = vmatmul.mubr.bf16.gmra.mrb[0].mxu0 %v1173
          %v1219 = vpop.f32.mrb[0].mxu0
          %v1220 = vadd.f32 %v1001, %v1219
          %v1221 = vpop.f32.mrb[0].mxu0
          %v1222 = vadd.f32 %v1002, %v1221
          %v1223 = vpop.f32.mrb[0].mxu0
          %v1224 = vadd.f32 %v1003, %v1223
          %v1225 = vpop.f32.mrb[0].mxu0
          %v1226 = vadd.f32 %v1004, %v1225
          %1227 = vdwg.mxu0
          %s1228 = sadd.s32 %s1005, 1
          %s1229 = smul.u32 %s1228, 4
          %s1230 = smul.addr %s1229, 4
          %s1231 = scalar_lea.vmem [#allocation5], %s1230
          %v1232 = vld [vmem:[%s1231] sm:$0xf]
          %v1233 = vld [vmem:[%s1231 + $0x4] sm:$0xf]
          %v1234 = vld [vmem:[%s1231 + $0x8] sm:$0xf]
          %v1235 = vld [vmem:[%s1231 + $0xc] sm:$0xf]
          %s1236 = smul.addr %s1229, 4
          %s1237 = scalar_lea.vmem [#allocation7], %s1236
          %v1238 = vld [vmem:[%s1237] sm:$0xf]
          %v1239 = vld [vmem:[%s1237 + $0x4] sm:$0xf]
          %v1240 = vld [vmem:[%s1237 + $0x8] sm:$0xf]
          %v1241 = vld [vmem:[%s1237 + $0xc] sm:$0xf]
          %v1242 = vmax.f32 %v1210, 0.0
          %v1243 = vmax.f32 %v1212, 0.0
          %v1244 = vmax.f32 %v1214, 0.0
          %v1245 = vmax.f32 %v1216, 0.0
          %v1246 = vmax.f32 %v1220, 0.0
          %v1247 = vmax.f32 %v1222, 0.0
          %v1248 = vmax.f32 %v1224, 0.0
          %v1249 = vmax.f32 %v1226, 0.0
          %1258 = vrot.lane.b32.xlu0 %v1242, 1
          %v1259 = vpop.permute.xlu0 %1258
          %1260 = vrot.lane.b32.xlu0 %v1243, 1
          %v1261 = vpop.permute.xlu0 %1260
          %1262 = vrot.lane.b32.xlu0 %v1244, 1
          %v1263 = vpop.permute.xlu0 %1262
          %1264 = vrot.lane.b32.xlu0 %v1245, 1
          %v1265 = vpop.permute.xlu0 %1264
          %1266 = vrot.lane.b32.xlu0 %v1246, 1
          %v1267 = vpop.permute.xlu0 %1266
          %1268 = vrot.lane.b32.xlu0 %v1247, 1
          %v1269 = vpop.permute.xlu0 %1268
          %1270 = vrot.lane.b32.xlu0 %v1248, 1
          %v1271 = vpop.permute.xlu0 %1270
          %1272 = vrot.lane.b32.xlu0 %v1249, 1
          %v1273 = vpop.permute.xlu0 %1272
          %vm1274 = vcmask 7168
          %v1275 = vsel %vm1274, %v1259, %v1261
          %v1276 = vsel %vm1274, %v1263, %v1265
          %v1277 = vsel %vm1274, %v1267, %v1269
          %v1278 = vsel %vm1274, %v1271, %v1273
          %v1287 = vsel %vm1274, 0.0, %v1259
          %v1288 = vsel %vm1274, 0.0, %v1263
          %v1289 = vsel %vm1274, 0.0, %v1267
          %v1290 = vsel %vm1274, 0.0, %v1271
          %1291 = vrot.lane.b32.xlu0 %v1242, 127
          %v1292 = vpop.permute.xlu0 %1291
          %1293 = vrot.lane.b32.xlu0 %v1243, 127
          %v1294 = vpop.permute.xlu0 %1293
          %1295 = vrot.lane.b32.xlu0 %v1244, 127
          %v1296 = vpop.permute.xlu0 %1295
          %1297 = vrot.lane.b32.xlu0 %v1245, 127
          %v1298 = vpop.permute.xlu0 %1297
          %1299 = vrot.lane.b32.xlu0 %v1246, 127
          %v1300 = vpop.permute.xlu0 %1299
          %1301 = vrot.lane.b32.xlu0 %v1247, 127
          %v1302 = vpop.permute.xlu0 %1301
          %1303 = vrot.lane.b32.xlu0 %v1248, 127
          %v1304 = vpop.permute.xlu0 %1303
          %1305 = vrot.lane.b32.xlu0 %v1249, 127
          %v1306 = vpop.permute.xlu0 %1305
          %v1307 = vsel %vm1051, %v1292, %v1294
          %v1308 = vsel %vm1051, %v1296, %v1298
          %v1309 = vsel %vm1051, %v1300, %v1302
          %v1310 = vsel %vm1051, %v1304, %v1306
          %v1319 = vsel %vm1051, %v1294, 0.0
          %v1320 = vsel %vm1051, %v1298, 0.0
          %v1321 = vsel %vm1051, %v1302, 0.0
          %v1322 = vsel %vm1051, %v1306, 0.0
          %v1323 = vpack.c.bf16 %v1288, %v1287
          %v1324 = vpack.c.bf16 %v1276, %v1275
          %v1325 = vpack.c.bf16 %v1290, %v1289
          %v1326 = vpack.c.bf16 %v1278, %v1277
          %v1327 = vpack.c.bf16 %v1308, %v1307
          %v1328 = vpack.c.bf16 %v1320, %v1319
          %v1329 = vpack.c.bf16 %v1310, %v1309
          %v1330 = vpack.c.bf16 %v1322, %v1321
          %v1335 = vunpack.c.l.b16 %v1232
          %v1336 = vunpack.c.l.b16 %v1233
          %v1337 = vunpack.c.l.b16 %v1234
          %v1338 = vunpack.c.l.b16 %v1235
          %v1339 = vpack.c.b16 %v1336, %v1335
          %v1340 = vpack.c.b16 %v1338, %v1337
          %v1342 = vsel %vm1086, %v1339, 0
          %v1345 = vsel %vm1086, %v1340, 0
          %1347 = vmatprep.subr.bf16.mxu0 %v1324
          %1348 = vmatpush1.bf16.msra.mxu0 %v1323
          %1349 = vmatprep.subr.bf16.mxu0 %v1326
          %1350 = vmatpush1.bf16.msra.mxu0 %v1325
          %1351 = vmatprep.subr.bf16.mxu0 %v1328
          %1352 = vmatpush1.bf16.msra.mxu0 %v1327
          %1353 = vmatprep.subr.bf16.mxu0 %v1330
          %1354 = vmatpush1.bf16.msra.mxu0 %v1329
          %1355 = vmatprep.subr.bf16.mxu0 0
          %1356 = vmatpush1.bf16.msra.mxu0 0
          %1357 = vmatprep.subr.bf16.mxu0 0
          %1358 = vmatpush1.bf16.msra.mxu0 0
          %1359 = vmatprep.subr.bf16.mxu0 0
          %1360 = vmatpush1.bf16.msra.mxu0 0
          %1361 = vmatprep.subr.bf16.mxu0 0
          %1362 = vmatpush1.bf16.msra.mxu0 0
          %1363 = vmatprep.subr.bf16.mxu0 0
          %1364 = vmatpush1.bf16.msra.mxu0 0
          %1365 = vmatprep.subr.bf16.mxu0 0
          %1366 = vmatpush1.bf16.msra.mxu0 0
          %1367 = vmatprep.subr.bf16.mxu0 0
          %1368 = vmatpush1.bf16.msra.mxu0 0
          %1369 = vmatprep.subr.bf16.mxu0 0
          %1370 = vmatpush1.bf16.msra.mxu0 0
          %1371 = vmatprep.subr.bf16.mxu0 0
          %1372 = vmatpush1.bf16.msra.mxu0 0
          %1373 = vmatprep.subr.bf16.mxu0 0
          %1374 = vmatpush1.bf16.msra.mxu0 0
          %1375 = vmatprep.subr.bf16.mxu0 0
          %1376 = vmatpush1.bf16.msra.mxu0 0
          %1377 = vmatprep.subr.bf16.mxu0 0
          %1378 = vmatpush1.bf16.msra.mxu0 0
          %1379 = vmatprep.mubr.bf16.mxu0 0
          %1380 = vmatmul.mubr.bf16.gmra.mrb[0].mxu0 %v1342
          %v1381 = vpop.f32.mrb[0].mxu0
          %v1382 = vadd.f32 0.0, %v1381
          %v1383 = vpop.f32.mrb[0].mxu0
          %v1384 = vadd.f32 0.0, %v1383
          %v1385 = vpop.f32.mrb[0].mxu0
          %v1386 = vadd.f32 0.0, %v1385
          %v1387 = vpop.f32.mrb[0].mxu0
          %v1388 = vadd.f32 0.0, %v1387
          %1389 = vmatprep.mubr.bf16.mxu0 0
          %1390 = vmatmul.mubr.bf16.gmra.mrb[0].mxu0 %v1345
          %v1391 = vpop.f32.mrb[0].mxu0
          %v1392 = vadd.f32 0.0, %v1391
          %v1393 = vpop.f32.mrb[0].mxu0
          %v1394 = vadd.f32 0.0, %v1393
          %v1395 = vpop.f32.mrb[0].mxu0
          %v1396 = vadd.f32 0.0, %v1395
          %v1397 = vpop.f32.mrb[0].mxu0
          %v1398 = vadd.f32 0.0, %v1397
          %1399 = vdwg.mxu0
          %v1400 = vmax.f32 %v1382, 0.0
          %v1401 = vmax.f32 %v1384, 0.0
          %v1402 = vmax.f32 %v1386, 0.0
          %v1403 = vmax.f32 %v1388, 0.0
          %v1404 = vmax.f32 %v1392, 0.0
          %v1405 = vmax.f32 %v1394, 0.0
          %v1406 = vmax.f32 %v1396, 0.0
          %v1407 = vmax.f32 %v1398, 0.0
          %v1408 = vpack.c.bf16 %v1402, %v1400
          %v1409 = vpack.c.bf16 %v1403, %v1401
          %v1410 = vpack.c.bf16 %v1406, %v1404
          %v1411 = vpack.c.bf16 %v1407, %v1405
          %v1416 = vunpack.c.l.b16 %v1238
          %v1417 = vunpack.c.l.b16 %v1239
          %v1418 = vunpack.c.l.b16 %v1240
          %v1419 = vunpack.c.l.b16 %v1241
          %v1420 = vpack.c.b16 %v1417, %v1416
          %v1421 = vpack.c.b16 %v1419, %v1418
          %v1423 = vsel %vm1168, %v1420, 0
          %v1426 = vsel %vm1168, %v1421, 0
          %1428 = vmatprep.subr.bf16.mxu0 %v1409
          %1429 = vmatpush1.bf16.msra.mxu0 %v1408
          %1430 = vmatprep.subr.bf16.mxu0 %v1411
          %1431 = vmatpush1.bf16.msra.mxu0 %v1410
          %1432 = vmatprep.subr.bf16.mxu0 0
          %1433 = vmatpush1.bf16.msra.mxu0 0
          %1434 = vmatprep.subr.bf16.mxu0 0
          %1435 = vmatpush1.bf16.msra.mxu0 0
          %1436 = vmatprep.subr.bf16.mxu0 0
          %1437 = vmatpush1.bf16.msra.mxu0 0
          %1438 = vmatprep.subr.bf16.mxu0 0
          %1439 = vmatpush1.bf16.msra.mxu0 0
          %1440 = vmatprep.subr.bf16.mxu0 0
          %1441 = vmatpush1.bf16.msra.mxu0 0
          %1442 = vmatprep.subr.bf16.mxu0 0
          %1443 = vmatpush1.bf16.msra.mxu0 0
          %1444 = vmatprep.subr.bf16.mxu0 0
          %1445 = vmatpush1.bf16.msra.mxu0 0
          %1446 = vmatprep.subr.bf16.mxu0 0
          %1447 = vmatpush1.bf16.msra.mxu0 0
          %1448 = vmatprep.subr.bf16.mxu0 0
          %1449 = vmatpush1.bf16.msra.mxu0 0
          %1450 = vmatprep.subr.bf16.mxu0 0
          %1451 = vmatpush1.bf16.msra.mxu0 0
          %1452 = vmatprep.subr.bf16.mxu0 0
          %1453 = vmatpush1.bf16.msra.mxu0 0
          %1454 = vmatprep.subr.bf16.mxu0 0
          %1455 = vmatpush1.bf16.msra.mxu0 0
          %1456 = vmatprep.subr.bf16.mxu0 0
          %1457 = vmatpush1.bf16.msra.mxu0 0
          %1458 = vmatprep.subr.bf16.mxu0 0
          %1459 = vmatpush1.bf16.msra.mxu0 0
          %1460 = vmatprep.mubr.bf16.mxu0 0
          %1461 = vmatmul.mubr.bf16.gmra.mrb[0].mxu0 %v1423
          %v1462 = vpop.f32.mrb[0].mxu0
          %v1463 = vadd.f32 %v1210, %v1462
          %v1464 = vpop.f32.mrb[0].mxu0
          %v1465 = vadd.f32 %v1212, %v1464
          %v1466 = vpop.f32.mrb[0].mxu0
          %v1467 = vadd.f32 %v1214, %v1466
          %v1468 = vpop.f32.mrb[0].mxu0
          %v1469 = vadd.f32 %v1216, %v1468
          %1470 = vmatprep.mubr.bf16.mxu0 0
          %1471 = vmatmul.mubr.bf16.gmra.mrb[0].mxu0 %v1426
          %v1472 = vpop.f32.mrb[0].mxu0
          %v1473 = vadd.f32 %v1220, %v1472
          %v1474 = vpop.f32.mrb[0].mxu0
          %v1475 = vadd.f32 %v1222, %v1474
          %v1476 = vpop.f32.mrb[0].mxu0
          %v1477 = vadd.f32 %v1224, %v1476
          %v1478 = vpop.f32.mrb[0].mxu0
          %v1479 = vadd.f32 %v1226, %v1478
          %1480 = vdwg.mxu0
          %s1481 = sadd.s32 %s1005, 2
          %s1482 = smul.u32 %s1481, 4
          %s1483 = smul.addr %s1482, 4
          %s1484 = scalar_lea.vmem [#allocation5], %s1483
          %v1485 = vld [vmem:[%s1484] sm:$0xf]
          %v1486 = vld [vmem:[%s1484 + $0x4] sm:$0xf]
          %v1487 = vld [vmem:[%s1484 + $0x8] sm:$0xf]
          %v1488 = vld [vmem:[%s1484 + $0xc] sm:$0xf]
          %s1489 = smul.addr %s1482, 4
          %s1490 = scalar_lea.vmem [#allocation7], %s1489
          %v1491 = vld [vmem:[%s1490] sm:$0xf]
          %v1492 = vld [vmem:[%s1490 + $0x4] sm:$0xf]
          %v1493 = vld [vmem:[%s1490 + $0x8] sm:$0xf]
          %v1494 = vld [vmem:[%s1490 + $0xc] sm:$0xf]
          %v1495 = vmax.f32 %v1463, 0.0
          %v1496 = vmax.f32 %v1465, 0.0
          %v1497 = vmax.f32 %v1467, 0.0
          %v1498 = vmax.f32 %v1469, 0.0
          %v1499 = vmax.f32 %v1473, 0.0
          %v1500 = vmax.f32 %v1475, 0.0
          %v1501 = vmax.f32 %v1477, 0.0
          %v1502 = vmax.f32 %v1479, 0.0
          %1511 = vrot.lane.b32.xlu0 %v1495, 2
          %v1512 = vpop.permute.xlu0 %1511
          %1513 = vrot.lane.b32.xlu0 %v1496, 2
          %v1514 = vpop.permute.xlu0 %1513
          %1515 = vrot.lane.b32.xlu0 %v1497, 2
          %v1516 = vpop.permute.xlu0 %1515
          %1517 = vrot.lane.b32.xlu0 %v1498, 2
          %v1518 = vpop.permute.xlu0 %1517
          %1519 = vrot.lane.b32.xlu0 %v1499, 2
          %v1520 = vpop.permute.xlu0 %1519
          %1521 = vrot.lane.b32.xlu0 %v1500, 2
          %v1522 = vpop.permute.xlu0 %1521
          %1523 = vrot.lane.b32.xlu0 %v1501, 2
          %v1524 = vpop.permute.xlu0 %1523
          %1525 = vrot.lane.b32.xlu0 %v1502, 2
          %v1526 = vpop.permute.xlu0 %1525
          %vm1527 = vcmask 15360
          %v1528 = vsel %vm1527, %v1512, %v1514
          %v1529 = vsel %vm1527, %v1516, %v1518
          %v1530 = vsel %vm1527, %v1520, %v1522
          %v1531 = vsel %vm1527, %v1524, %v1526
          %v1540 = vsel %vm1527, 0.0, %v1512
          %v1541 = vsel %vm1527, 0.0, %v1516
          %v1542 = vsel %vm1527, 0.0, %v1520
          %v1543 = vsel %vm1527, 0.0, %v1524
          %1544 = vrot.lane.b32.xlu0 %v1495, 126
          %v1545 = vpop.permute.xlu0 %1544
          %1546 = vrot.lane.b32.xlu0 %v1496, 126
          %v1547 = vpop.permute.xlu0 %1546
          %1548 = vrot.lane.b32.xlu0 %v1497, 126
          %v1549 = vpop.permute.xlu0 %1548
          %1550 = vrot.lane.b32.xlu0 %v1498, 126
          %v1551 = vpop.permute.xlu0 %1550
          %1552 = vrot.lane.b32.xlu0 %v1499, 126
          %v1553 = vpop.permute.xlu0 %1552
          %1554 = vrot.lane.b32.xlu0 %v1500, 126
          %v1555 = vpop.permute.xlu0 %1554
          %1556 = vrot.lane.b32.xlu0 %v1501, 126
          %v1557 = vpop.permute.xlu0 %1556
          %1558 = vrot.lane.b32.xlu0 %v1502, 126
          %v1559 = vpop.permute.xlu0 %1558
          %vm1560 = vcmask 1031168
          %v1561 = vsel %vm1560, %v1545, %v1547
          %v1562 = vsel %vm1560, %v1549, %v1551
          %v1563 = vsel %vm1560, %v1553, %v1555
          %v1564 = vsel %vm1560, %v1557, %v1559
          %v1573 = vsel %vm1560, %v1547, 0.0
          %v1574 = vsel %vm1560, %v1551, 0.0
          %v1575 = vsel %vm1560, %v1555, 0.0
          %v1576 = vsel %vm1560, %v1559, 0.0
          %v1577 = vpack.c.bf16 %v1541, %v1540
          %v1578 = vpack.c.bf16 %v1529, %v1528
          %v1579 = vpack.c.bf16 %v1543, %v1542
          %v1580 = vpack.c.bf16 %v1531, %v1530
          %v1581 = vpack.c.bf16 %v1562, %v1561
          %v1582 = vpack.c.bf16 %v1574, %v1573
          %v1583 = vpack.c.bf16 %v1564, %v1563
          %v1584 = vpack.c.bf16 %v1576, %v1575
          %v1589 = vunpack.c.l.b16 %v1485
          %v1590 = vunpack.c.l.b16 %v1486
          %v1591 = vunpack.c.l.b16 %v1487
          %v1592 = vunpack.c.l.b16 %v1488
          %v1593 = vpack.c.b16 %v1590, %v1589
          %v1594 = vpack.c.b16 %v1592, %v1591
          %v1596 = vsel %vm1086, %v1593, 0
          %v1599 = vsel %vm1086, %v1594, 0
          %1601 = vmatprep.subr.bf16.mxu0 %v1578
          %1602 = vmatpush1.bf16.msra.mxu0 %v1577
          %1603 = vmatprep.subr.bf16.mxu0 %v1580
          %1604 = vmatpush1.bf16.msra.mxu0 %v1579
          %1605 = vmatprep.subr.bf16.mxu0 %v1582
          %1606 = vmatpush1.bf16.msra.mxu0 %v1581
          %1607 = vmatprep.subr.bf16.mxu0 %v1584
          %1608 = vmatpush1.bf16.msra.mxu0 %v1583
          %1609 = vmatprep.subr.bf16.mxu0 0
          %1610 = vmatpush1.bf16.msra.mxu0 0
          %1611 = vmatprep.subr.bf16.mxu0 0
          %1612 = vmatpush1.bf16.msra.mxu0 0
          %1613 = vmatprep.subr.bf16.mxu0 0
          %1614 = vmatpush1.bf16.msra.mxu0 0
          %1615 = vmatprep.subr.bf16.mxu0 0
          %1616 = vmatpush1.bf16.msra.mxu0 0
          %1617 = vmatprep.subr.bf16.mxu0 0
          %1618 = vmatpush1.bf16.msra.mxu0 0
          %1619 = vmatprep.subr.bf16.mxu0 0
          %1620 = vmatpush1.bf16.msra.mxu0 0
          %1621 = vmatprep.subr.bf16.mxu0 0
          %1622 = vmatpush1.bf16.msra.mxu0 0
          %1623 = vmatprep.subr.bf16.mxu0 0
          %1624 = vmatpush1.bf16.msra.mxu0 0
          %1625 = vmatprep.subr.bf16.mxu0 0
          %1626 = vmatpush1.bf16.msra.mxu0 0
          %1627 = vmatprep.subr.bf16.mxu0 0
          %1628 = vmatpush1.bf16.msra.mxu0 0
          %1629 = vmatprep.subr.bf16.mxu0 0
          %1630 = vmatpush1.bf16.msra.mxu0 0
          %1631 = vmatprep.subr.bf16.mxu0 0
          %1632 = vmatpush1.bf16.msra.mxu0 0
          %1633 = vmatprep.mubr.bf16.mxu0 0
          %1634 = vmatmul.mubr.bf16.gmra.mrb[0].mxu0 %v1596
          %v1635 = vpop.f32.mrb[0].mxu0
          %v1636 = vadd.f32 0.0, %v1635
          %v1637 = vpop.f32.mrb[0].mxu0
          %v1638 = vadd.f32 0.0, %v1637
          %v1639 = vpop.f32.mrb[0].mxu0
          %v1640 = vadd.f32 0.0, %v1639
          %v1641 = vpop.f32.mrb[0].mxu0
          %v1642 = vadd.f32 0.0, %v1641
          %1643 = vmatprep.mubr.bf16.mxu0 0
          %1644 = vmatmul.mubr.bf16.gmra.mrb[0].mxu0 %v1599
          %v1645 = vpop.f32.mrb[0].mxu0
          %v1646 = vadd.f32 0.0, %v1645
          %v1647 = vpop.f32.mrb[0].mxu0
          %v1648 = vadd.f32 0.0, %v1647
          %v1649 = vpop.f32.mrb[0].mxu0
          %v1650 = vadd.f32 0.0, %v1649
          %v1651 = vpop.f32.mrb[0].mxu0
          %v1652 = vadd.f32 0.0, %v1651
          %1653 = vdwg.mxu0
          %v1654 = vmax.f32 %v1636, 0.0
          %v1655 = vmax.f32 %v1638, 0.0
          %v1656 = vmax.f32 %v1640, 0.0
          %v1657 = vmax.f32 %v1642, 0.0
          %v1658 = vmax.f32 %v1646, 0.0
          %v1659 = vmax.f32 %v1648, 0.0
          %v1660 = vmax.f32 %v1650, 0.0
          %v1661 = vmax.f32 %v1652, 0.0
          %v1662 = vpack.c.bf16 %v1656, %v1654
          %v1663 = vpack.c.bf16 %v1657, %v1655
          %v1664 = vpack.c.bf16 %v1660, %v1658
          %v1665 = vpack.c.bf16 %v1661, %v1659
          %v1670 = vunpack.c.l.b16 %v1491
          %v1671 = vunpack.c.l.b16 %v1492
          %v1672 = vunpack.c.l.b16 %v1493
          %v1673 = vunpack.c.l.b16 %v1494
          %v1674 = vpack.c.b16 %v1671, %v1670
          %v1675 = vpack.c.b16 %v1673, %v1672
          %v1677 = vsel %vm1168, %v1674, 0
          %v1680 = vsel %vm1168, %v1675, 0
          %1682 = vmatprep.subr.bf16.mxu0 %v1663
          %1683 = vmatpush1.bf16.msra.mxu0 %v1662
          %1684 = vmatprep.subr.bf16.mxu0 %v1665
          %1685 = vmatpush1.bf16.msra.mxu0 %v1664
          %1686 = vmatprep.subr.bf16.mxu0 0
          %1687 = vmatpush1.bf16.msra.mxu0 0
          %1688 = vmatprep.subr.bf16.mxu0 0
          %1689 = vmatpush1.bf16.msra.mxu0 0
          %1690 = vmatprep.subr.bf16.mxu0 0
          %1691 = vmatpush1.bf16.msra.mxu0 0
          %1692 = vmatprep.subr.bf16.mxu0 0
          %1693 = vmatpush1.bf16.msra.mxu0 0
          %1694 = vmatprep.subr.bf16.mxu0 0
          %1695 = vmatpush1.bf16.msra.mxu0 0
          %1696 = vmatprep.subr.bf16.mxu0 0
          %1697 = vmatpush1.bf16.msra.mxu0 0
          %1698 = vmatprep.subr.bf16.mxu0 0
          %1699 = vmatpush1.bf16.msra.mxu0 0
          %1700 = vmatprep.subr.bf16.mxu0 0
          %1701 = vmatpush1.bf16.msra.mxu0 0
          %1702 = vmatprep.subr.bf16.mxu0 0
          %1703 = vmatpush1.bf16.msra.mxu0 0
          %1704 = vmatprep.subr.bf16.mxu0 0
          %1705 = vmatpush1.bf16.msra.mxu0 0
          %1706 = vmatprep.subr.bf16.mxu0 0
          %1707 = vmatpush1.bf16.msra.mxu0 0
          %1708 = vmatprep.subr.bf16.mxu0 0
          %1709 = vmatpush1.bf16.msra.mxu0 0
          %1710 = vmatprep.subr.bf16.mxu0 0
          %1711 = vmatpush1.bf16.msra.mxu0 0
          %1712 = vmatprep.subr.bf16.mxu0 0
          %1713 = vmatpush1.bf16.msra.mxu0 0
          %1714 = vmatprep.mubr.bf16.mxu0 0
          %1715 = vmatmul.mubr.bf16.gmra.mrb[0].mxu0 %v1677
          %v1716 = vpop.f32.mrb[0].mxu0
          %v1717 = vadd.f32 %v1463, %v1716
          %v1718 = vpop.f32.mrb[0].mxu0
          %v1719 = vadd.f32 %v1465, %v1718
          %v1720 = vpop.f32.mrb[0].mxu0
          %v1721 = vadd.f32 %v1467, %v1720
          %v1722 = vpop.f32.mrb[0].mxu0
          %v1723 = vadd.f32 %v1469, %v1722
          %1724 = vmatprep.mubr.bf16.mxu0 0
          %1725 = vmatmul.mubr.bf16.gmra.mrb[0].mxu0 %v1680
          %v1726 = vpop.f32.mrb[0].mxu0
          %v1727 = vadd.f32 %v1473, %v1726
          %v1728 = vpop.f32.mrb[0].mxu0
          %v1729 = vadd.f32 %v1475, %v1728
          %v1730 = vpop.f32.mrb[0].mxu0
          %v1731 = vadd.f32 %v1477, %v1730
          %v1732 = vpop.f32.mrb[0].mxu0
          %v1733 = vadd.f32 %v1479, %v1732
          %1734 = vdwg.mxu0
        $region56: #{temporal_encoder_pallas.1} parent=31 // loop_footer
          %s996 = sadd.s32 1, %s992
        $region57: #{temporal_encoder_pallas.1} parent=31 // loop_footer_branch
          %991 = sbr.rel target = $region53
        $region58: #{temporal_encoder_pallas.1} parent=31 // loop_exit
          _
        %s1735 = scalar_lea.vmem %s218, 64 [#allocation8]
        %1736 = vst [vmem:[%s1735] sm:$0xff] %v997
        %1737 = vst [vmem:[%s1735 + $0x8] sm:$0xff] %v998
        %1738 = vst [vmem:[%s1735 + $0x10] sm:$0xff] %v999
        %1739 = vst [vmem:[%s1735 + $0x18] sm:$0xff] %v1000
        %1740 = vst [vmem:[%s1735 + $0x20] sm:$0xff] %v1001
        %1741 = vst [vmem:[%s1735 + $0x28] sm:$0xff] %v1002
        %1742 = vst [vmem:[%s1735 + $0x30] sm:$0xff] %v1003
        %1743 = vst [vmem:[%s1735 + $0x38] sm:$0xff] %v1004
        %s1744 = sand.u32 %s97, 1
        %s1745 = scalar_lea.sflag [#allocation4], %s1744
        %s1746 = sand.u32 %s97, 1
        %s1747 = smul.addr %s1746, 128
        %s1748 = scalar_lea.vmem [#allocation8], %s1747
        // Predicated region
        $region59: #{temporal_encoder_pallas.1} parent=31 // pred_check
          %p1749 = pneg %p107
        $region60: #{temporal_encoder_pallas.1} parent=31 // pred_check_branch
          %1751 = sbr.rel (%p1749) target = $region62
        $region61: #{temporal_encoder_pallas.1} parent=31 // pred_region
          %s1752 = smul.u32 2, %s21
          %s1754 = ssub.s32 2048, 2048
          %1755 = vsyncadd %s1745, %s1754
          %s1756 = smul.addr %s1752, 8
          %s1757 = smul.addr %s1756, 128
          %s1758 = scalar_lea.hbm %s3, %s1757
          %s1759 = sshll.u32 %s1748, 4
          %s1760 = int_to_ptr.vmem [resolvable:$true] %s1759
          %1765 = dma.vmem_to_hbm [thread:$0]  %s1760, 2048, %s1758, %s1745, 256, 256, 16
        $region62: #{temporal_encoder_pallas.1} parent=31 // pred_fallthru
          _
      $region32: #{temporal_encoder_pallas.1} parent=5 // pred_fallthru
        _
      %p1766 = scmp.le.s32.totalorder 2, %s16
      // Predicated region
      $region63: #{temporal_encoder_pallas.1} parent=5 // pred_check
        %p1767 = pneg %p1766
      $region64: #{temporal_encoder_pallas.1} parent=5 // pred_check_branch
        %1769 = sbr.rel (%p1767) target = $region66
      $region65: #{temporal_encoder_pallas.1} parent=5 // pred_region
        %s1770 = ssub.s32 %s16, 2
        // Predicated region
        $region67: #{temporal_encoder_pallas.1} parent=65 // pred_check
          %p1771 = pneg %p113
        $region68: #{temporal_encoder_pallas.1} parent=65 // pred_check_branch
          %1773 = sbr.rel (%p1771) target = $region70
        $region69: #{temporal_encoder_pallas.1} parent=65 // pred_region
          %s1774 = sand.u32 %s98, 1
          %s1775 = scalar_lea.sflag [#allocation4], %s1774
          %s1776 = sand.u32 %s98, 1
          %s1777 = smul.addr %s1776, 128
          %s1778 = scalar_lea.vmem [#allocation8], %s1777
          %1779 = dma.done %s1775, 2048
        $region70: #{temporal_encoder_pallas.1} parent=65 // pred_fallthru
          _
      $region66: #{temporal_encoder_pallas.1} parent=5 // pred_fallthru
        _
    $region6: #{temporal_encoder_pallas.1} parent=1 // loop_footer
      %s20 = sadd.s32 1, %s16
    $region7: #{temporal_encoder_pallas.1} parent=1 // loop_footer_branch
      %15 = sbr.rel target = $region3
    $region8: #{temporal_encoder_pallas.1} parent=1 // loop_exit
      _
    %1780 = vsyncpa [#allocation3], 1
    %s1781 = scalar_lea.sflag [#allocation3], 1
    %1782 = vsyncpa %s1781, 1
    %1783 = vsyncpa [#allocation6], 1
    %1784 = vsyncpa [#allocation4], 1
    %s1785 = scalar_lea.sflag [#allocation4], 1
    %1786 = vsyncpa %s1785, 1

</llo_original>
